<compile_context>
chip_gen: v7x
topology: tpu7x:2x2x1
jax: 0.10.0
libtpu: 0.0.40
codegen_flags: <defaults>
</compile_context>

<pallas_src>
import jax
import jax.numpy as jnp
import numpy as np
from jax import lax
from jax.experimental import pallas as pl
from jax.experimental.pallas import tpu as pltpu

N, H, W = 2, 16, 16
S = H * W                                   # 256 lanes per image
FS = N * S                                  # 512: both images fused on lanes
C_IN, C_EXP, C_SQ, C_OUT = 8, 32, 8, 8      # C_SQ = _make_divisible(32 // 4, 8)
EPS = 1e-3                                  # BatchNorm2d(eps=0.001)
PAD = 128                                   # vreg-aligned zero pad (>= W + 1)

# packed-parameter lane offsets
P32_WEXP, P32_WFC2, P32_WDW = 0, 8, 16      # widths 8, 8, 9
P32_EXPB, P32_DWB, P32_BFC2 = 25, 26, 27
P8_WFC1, P8_WPROJ, P8_BFC1, P8_PROJB = 0, 32, 64, 65


def _hardswish(x):
    # matches the module's Hardswish: x * hardtanh(x + 3, 0, 6) / 6
    return x * jnp.clip(x + 3.0, 0.0, 6.0) / 6.0


def inverted_residual_kernel(x_ref, p32_ref, p8_ref, o_ref):
    x = x_ref[...]                                        # (C_IN, FS) = (8, 512)

    # Static slices of the two packed parameter slabs (BN scales pre-folded).
    w_exp = p32_ref[:, P32_WEXP:P32_WEXP + C_IN]          # (32, 8)
    w_fc2 = p32_ref[:, P32_WFC2:P32_WFC2 + C_SQ]          # (32, 8)
    w_dw = p32_ref[:, P32_WDW:P32_WDW + 9]                # (32, 9)
    exp_b = p32_ref[:, P32_EXPB:P32_EXPB + 1]             # (32, 1)
    dw_b = p32_ref[:, P32_DWB:P32_DWB + 1]                # (32, 1)
    b_fc2 = p32_ref[:, P32_BFC2:P32_BFC2 + 1]             # (32, 1)
    w_fc1 = p8_ref[:, P8_WFC1:P8_WFC1 + C_EXP]            # (8, 32)
    w_proj = p8_ref[:, P8_WPROJ:P8_WPROJ + C_EXP]         # (8, 32)
    b_fc1 = p8_ref[:, P8_BFC1:P8_BFC1 + 1]                # (8, 1)
    proj_b = p8_ref[:, P8_PROJB:P8_PROJB + 1]             # (8, 1)

    # ---- 1x1 expand conv (BN scale folded into weights) + bias + Hardswish ----
    # One MXU pass for both images: RHS is (8, 512).
    y = _hardswish(jnp.dot(w_exp, x, preferred_element_type=jnp.float32) + exp_b)

    # W-boundary masks (shared by both images); H / batch boundaries fall into
    # the per-image zero pad below and need no mask.
    lane = lax.broadcasted_iota(jnp.int32, (1, S), 1)
    w_pos = lane % W
    m_l = (w_pos > 0).astype(jnp.float32)          # zero when reading w-1 at w==0
    m_r = (w_pos < W - 1).astype(jnp.float32)      # zero when reading w+1 at w==W-1

    zpad = jnp.zeros((C_EXP, PAD), jnp.float32)
    out_halves = []
    for img in range(N):                            # static unroll over 2 images
        y_i = y[:, img * S:(img + 1) * S]           # (32, 256), aligned slice

        # ---- 3x3 depthwise conv, stride 1, padding 1 (register-resident) ----
        y_pad = jnp.concatenate([zpad, y_i, zpad], axis=1)      # (32, 512)
        acc = y_i * w_dw[:, 4:5]                    # center tap initialises acc
        for dy in range(3):
            for dx in range(3):
                if dy == 1 and dx == 1:
                    continue
                off = (dy - 1) * W + (dx - 1)
                tap = y_pad[:, PAD + off:PAD + off + S]         # static lane slice
                if dx == 0:
                    tap = tap * m_l
                elif dx == 2:
                    tap = tap * m_r
                k = dy * 3 + dx
                acc = acc + tap * w_dw[:, k:k + 1]
        z_i = _hardswish(acc + dw_b)                # (32, 256)

        # ---- SqueezeExcitation (per image): pool -> fc1 -> ReLU -> fc2 -> hsig ----
        # fc1 is linear, so fc1(mean(z)) == mean(fc1(z)) (keeps the MXU RHS lane-dense).
        t1 = jnp.dot(w_fc1, z_i, preferred_element_type=jnp.float32)        # (8, 256)
        s1 = jnp.maximum(jnp.mean(t1, axis=1, keepdims=True) + b_fc1, 0.0)  # (8, 1)
        s1_b = jnp.broadcast_to(s1, (C_SQ, 128))
        s2 = jnp.dot(w_fc2, s1_b, preferred_element_type=jnp.float32)[:, 0:1] + b_fc2
        se = jnp.clip(s2 + 3.0, 0.0, 6.0) / 6.0     # hard-sigmoid, (32, 1)
        out_halves.append(z_i * se)

    z_se = jnp.concatenate(out_halves, axis=1)      # (32, 512), aligned concat

    # ---- 1x1 project conv (BN scale folded) + bias + residual ----
    o_ref[...] = (jnp.dot(w_proj, z_se, preferred_element_type=jnp.float32)
                  + proj_b + x)


def inverted_residual_pallas(x_nchw, p32, p8):
    # Layout plumbing only: NCHW -> (C_IN, N*S) with the two images fused on lanes.
    x2 = (x_nchw.astype(jnp.float32)
          .reshape(N, C_IN, S).transpose(1, 0, 2).reshape(C_IN, FS))

    out = pl.pallas_call(
        inverted_residual_kernel,
        out_shape=jax.ShapeDtypeStruct((C_OUT, FS), jnp.float32),
        grid=(1,),                                   # single fused step
        in_specs=[
            pl.BlockSpec((C_IN, FS), lambda i: (0, 0)),
            pl.BlockSpec((C_EXP, 128), lambda i: (0, 0)),
            pl.BlockSpec((C_SQ, 128), lambda i: (0, 0)),
        ],
        out_specs=pl.BlockSpec((C_OUT, FS), lambda i: (0, 0)),
        compiler_params=pltpu.CompilerParams(dimension_semantics=("arbitrary",)),
    )(x2, p32, p8)

    return out.reshape(C_OUT, N, S).transpose(1, 0, 2).reshape(N, C_OUT, H, W)


def make_params(key):
    ks = jax.random.split(key, 10)

    def bn_params(k, c):
        k1, k2, k3, k4 = jax.random.split(k, 4)
        gamma = 1.0 + 0.1 * jax.random.normal(k1, (c,), jnp.float32)
        beta = 0.1 * jax.random.normal(k2, (c,), jnp.float32)
        mean = 0.1 * jax.random.normal(k3, (c,), jnp.float32)
        var = 1.0 + 0.1 * jax.random.uniform(k4, (c,), jnp.float32)
        return gamma, beta, mean, var

    # torch-layout (OIHW) weights for the reference path
    torch_p = {
        "w_exp_t": 0.1 * jax.random.normal(ks[0], (C_EXP, C_IN, 1, 1), jnp.float32),
        "w_dw_t": 0.1 * jax.random.normal(ks[1], (C_EXP, 1, 3, 3), jnp.float32),
        "w_proj_t": 0.1 * jax.random.normal(ks[2], (C_OUT, C_EXP, 1, 1), jnp.float32),
        "w_fc1_t": 0.1 * jax.random.normal(ks[3], (C_SQ, C_EXP, 1, 1), jnp.float32),
        "b_fc1": 0.1 * jax.random.normal(ks[4], (C_SQ,), jnp.float32),
        "w_fc2_t": 0.1 * jax.random.normal(ks[5], (C_EXP, C_SQ, 1, 1), jnp.float32),
        "b_fc2": 0.1 * jax.random.normal(ks[6], (C_EXP,), jnp.float32),
        "bn_exp": bn_params(ks[7], C_EXP),
        "bn_dw": bn_params(ks[8], C_EXP),
        "bn_proj": bn_params(ks[9], C_OUT),
    }

    def fold(bn):
        gamma, beta, mean, var = bn
        s = gamma / jnp.sqrt(var + EPS)
        return s, beta - mean * s

    exp_s, exp_b = fold(torch_p["bn_exp"])
    dw_s, dw_b = fold(torch_p["bn_dw"])
    proj_s, proj_b = fold(torch_p["bn_proj"])

    # Fold BN scales straight into the conv weights (one-time wrapper transform).
    w_exp_f = torch_p["w_exp_t"][:, :, 0, 0] * exp_s[:, None]             # (32, 8)
    w_dw_f = torch_p["w_dw_t"][:, 0].reshape(C_EXP, 9) * dw_s[:, None]    # (32, 9)
    w_proj_f = torch_p["w_proj_t"][:, :, 0, 0] * proj_s[:, None]          # (8, 32)
    w_fc1 = torch_p["w_fc1_t"][:, :, 0, 0]                                # (8, 32)
    w_fc2 = torch_p["w_fc2_t"][:, :, 0, 0]                                # (32, 8)

    # Pack all parameters into two lane-padded slabs => 2 weight DMAs instead of 13.
    p32 = jnp.zeros((C_EXP, 128), jnp.float32)
    p32 = p32.at[:, P32_WEXP:P32_WEXP + C_IN].set(w_exp_f)
    p32 = p32.at[:, P32_WFC2:P32_WFC2 + C_SQ].set(w_fc2)
    p32 = p32.at[:, P32_WDW:P32_WDW + 9].set(w_dw_f)
    p32 = p32.at[:, P32_EXPB].set(exp_b)
    p32 = p32.at[:, P32_DWB].set(dw_b)
    p32 = p32.at[:, P32_BFC2].set(torch_p["b_fc2"])

    # (C_SQ == C_OUT == 8 in this config, so fc1/proj rows share one 8-row slab.)
    p8 = jnp.zeros((C_SQ, 128), jnp.float32)
    p8 = p8.at[:, P8_WFC1:P8_WFC1 + C_EXP].set(w_fc1)
    p8 = p8.at[:, P8_WPROJ:P8_WPROJ + C_EXP].set(w_proj_f)
    p8 = p8.at[:, P8_BFC1].set(torch_p["b_fc1"])
    p8 = p8.at[:, P8_PROJB].set(proj_b)

    return p32, p8, torch_p


def reference_forward(x, tp):
    """Pure-JAX reference mirroring the PyTorch forward (NCHW, eval-mode BN)."""
    dn = ("NCHW", "OIHW", "NCHW")

    def bn_apply(v, bn):
        gamma, beta, mean, var = bn
        inv = gamma / jnp.sqrt(var + EPS)
        return (v - mean[None, :, None, None]) * inv[None, :, None, None] \
            + beta[None, :, None, None]

    y = lax.conv_general_dilated(x, tp["w_exp_t"], (1, 1), "VALID", dimension_numbers=dn)
    y = _hardswish(bn_apply(y, tp["bn_exp"]))
    y = lax.conv_general_dilated(y, tp["w_dw_t"], (1, 1), ((1, 1), (1, 1)),
                                 dimension_numbers=dn, feature_group_count=C_EXP)
    y = _hardswish(bn_apply(y, tp["bn_dw"]))
    s = jnp.mean(y, axis=(2, 3), keepdims=True)
    s = lax.conv_general_dilated(s, tp["w_fc1_t"], (1, 1), "VALID", dimension_numbers=dn) \
        + tp["b_fc1"][None, :, None, None]
    s = jnp.maximum(s, 0.0)
    s = lax.conv_general_dilated(s, tp["w_fc2_t"], (1, 1), "VALID", dimension_numbers=dn) \
        + tp["b_fc2"][None, :, None, None]
    s = jnp.clip(s + 3.0, 0.0, 6.0) / 6.0
    y = y * s
    y = lax.conv_general_dilated(y, tp["w_proj_t"], (1, 1), "VALID", dimension_numbers=dn)
    y = bn_apply(y, tp["bn_proj"])
    return y + x


if __name__ == "__main__":
    key = jax.random.PRNGKey(0)
    k_x, k_p = jax.random.split(key)
    x = jax.random.normal(k_x, (N, C_IN, H, W), jnp.float32)   # PyTorch NCHW input

    p32, p8, torch_params = make_params(k_p)

    out = jax.block_until_ready(inverted_residual_pallas(x, p32, p8))

    ref = jax.block_until_ready(reference_forward(x, torch_params))
    assert out.shape == (N, C_OUT, H, W)
    np.testing.assert_allclose(np.asarray(out), np.asarray(ref), atol=2e-4, rtol=2e-4)

    print("KERNEL_OK")
</pallas_src>

<mosaic_0001>
module attributes {stable_mosaic.version = 11 : i64} {
  func.func @inverted_residual_kernel(%arg0: i32, %arg1: memref<8x512xf32, #tpu.memory_space<vmem>>, %arg2: memref<32x128xf32, #tpu.memory_space<vmem>>, %arg3: memref<8x128xf32, #tpu.memory_space<vmem>>, %arg4: memref<8x512xf32, #tpu.memory_space<vmem>>) attributes {dimension_semantics = [#tpu.dimension_semantics<arbitrary>], iteration_bounds = array<i64: 1>, scalar_prefetch = 0 : i64, scratch_operands = 0 : i64, tpu.core_type = #tpu.core_type<tc>, window_params = [{pipeline_mode = #tpu.pipeline_mode<synchronous>, transform_indices = @transform_0, window_bounds = array<i64: 8, 512>}, {pipeline_mode = #tpu.pipeline_mode<synchronous>, transform_indices = @transform_1, window_bounds = array<i64: 32, 128>}, {pipeline_mode = #tpu.pipeline_mode<synchronous>, transform_indices = @transform_2, window_bounds = array<i64: 8, 128>}, {pipeline_mode = #tpu.pipeline_mode<synchronous>, transform_indices = @transform_3, window_bounds = array<i64: 8, 512>}]} {
    %c0 = arith.constant 0 : index
    %c0_0 = arith.constant 0 : index
    %0 = vector.load %arg1[%c0, %c0_0] : memref<8x512xf32, #tpu.memory_space<vmem>>, vector<8x512xf32>
    %c0_1 = arith.constant 0 : index
    %c0_2 = arith.constant 0 : index
    %1 = vector.load %arg2[%c0_1, %c0_2] : memref<32x128xf32, #tpu.memory_space<vmem>>, vector<32x8xf32>
    %c0_3 = arith.constant 0 : index
    %c8 = arith.constant 8 : index
    %2 = vector.load %arg2[%c0_3, %c8] : memref<32x128xf32, #tpu.memory_space<vmem>>, vector<32x8xf32>
    %c0_4 = arith.constant 0 : index
    %c16 = arith.constant 16 : index
    %3 = vector.load %arg2[%c0_4, %c16] : memref<32x128xf32, #tpu.memory_space<vmem>>, vector<32x9xf32>
    %c0_5 = arith.constant 0 : index
    %c25 = arith.constant 25 : index
    %4 = vector.load %arg2[%c0_5, %c25] : memref<32x128xf32, #tpu.memory_space<vmem>>, vector<32x1xf32>
    %c0_6 = arith.constant 0 : index
    %c26 = arith.constant 26 : index
    %5 = vector.load %arg2[%c0_6, %c26] : memref<32x128xf32, #tpu.memory_space<vmem>>, vector<32x1xf32>
    %c0_7 = arith.constant 0 : index
    %c27 = arith.constant 27 : index
    %6 = vector.load %arg2[%c0_7, %c27] : memref<32x128xf32, #tpu.memory_space<vmem>>, vector<32x1xf32>
    %c0_8 = arith.constant 0 : index
    %c0_9 = arith.constant 0 : index
    %7 = vector.load %arg3[%c0_8, %c0_9] : memref<8x128xf32, #tpu.memory_space<vmem>>, vector<8x32xf32>
    %c0_10 = arith.constant 0 : index
    %c32 = arith.constant 32 : index
    %8 = vector.load %arg3[%c0_10, %c32] : memref<8x128xf32, #tpu.memory_space<vmem>>, vector<8x32xf32>
    %c0_11 = arith.constant 0 : index
    %c64 = arith.constant 64 : index
    %9 = vector.load %arg3[%c0_11, %c64] : memref<8x128xf32, #tpu.memory_space<vmem>>, vector<8x1xf32>
    %c0_12 = arith.constant 0 : index
    %c65 = arith.constant 65 : index
    %10 = vector.load %arg3[%c0_12, %c65] : memref<8x128xf32, #tpu.memory_space<vmem>>, vector<8x1xf32>
    %cst = arith.constant dense<0.000000e+00> : vector<32x512xf32>
    %11 = tpu.matmul %1, %0, %cst {dimension_numbers = #tpu.dot_dimension_numbers<[1], [0], [0], [1], [0, 0, 1, 1], [], []>} : vector<32x8xf32>, vector<8x512xf32>, vector<32x512xf32> -> vector<32x512xf32>
    %12 = vector.broadcast %4 : vector<32x1xf32> to vector<32x512xf32>
    %13 = arith.addf %11, %12 : vector<32x512xf32>
    %cst_13 = arith.constant 3.000000e+00 : f32
    %14 = vector.broadcast %cst_13 : f32 to vector<32x512xf32>
    %15 = arith.addf %13, %14 : vector<32x512xf32>
    %cst_14 = arith.constant 0.000000e+00 : f32
    %cst_15 = arith.constant 6.000000e+00 : f32
    %16 = vector.broadcast %cst_14 : f32 to vector<32x512xf32>
    %17 = arith.maximumf %16, %15 : vector<32x512xf32>
    %18 = vector.broadcast %cst_15 : f32 to vector<32x512xf32>
    %19 = arith.minimumf %18, %17 : vector<32x512xf32>
    %20 = arith.mulf %13, %19 : vector<32x512xf32>
    %cst_16 = arith.constant 6.000000e+00 : f32
    %21 = vector.broadcast %cst_16 : f32 to vector<32x512xf32>
    %22 = arith.divf %20, %21 : vector<32x512xf32>
    %23 = tpu.iota {dimensions = array<i32: 1>} : vector<1x256xi32>
    %c16_i32 = arith.constant 16 : i32
    %c0_i32 = arith.constant 0 : i32
    %24 = arith.cmpi eq, %c16_i32, %c0_i32 : i32
    %c1_i32 = arith.constant 1 : i32
    %25 = arith.select %24, %c1_i32, %c16_i32 : i32
    %26 = vector.broadcast %25 : i32 to vector<1x256xi32>
    %27 = arith.remsi %23, %26 : vector<1x256xi32>
    %c0_i32_17 = arith.constant 0 : i32
    %28 = vector.broadcast %c0_i32_17 : i32 to vector<1x256xi32>
    %29 = arith.cmpi ne, %27, %28 : vector<1x256xi32>
    %c0_i32_18 = arith.constant 0 : i32
    %30 = vector.broadcast %c0_i32_18 : i32 to vector<1x256xi32>
    %31 = arith.cmpi slt, %27, %30 : vector<1x256xi32>
    %c0_i32_19 = arith.constant 0 : i32
    %32 = arith.cmpi slt, %25, %c0_i32_19 : i32
    %33 = vector.broadcast %32 : i1 to vector<1x256xi1>
    %34 = vector.broadcast %33 : vector<1x256xi1> to vector<1x256xi1>
    %35 = arith.xori %31, %34 : vector<1x256xi1>
    %36 = arith.andi %35, %29 : vector<1x256xi1>
    %37 = vector.broadcast %25 : i32 to vector<1x256xi32>
    %38 = arith.addi %27, %37 : vector<1x256xi32>
    %39 = arith.select %36, %38, %27 : vector<1x256xi1>, vector<1x256xi32>
    %c0_i32_20 = arith.constant 0 : i32
    %40 = vector.broadcast %c0_i32_20 : i32 to vector<1x256xi32>
    %41 = arith.cmpi sgt, %39, %40 : vector<1x256xi32>
    %42 = arith.extui %41 : vector<1x256xi1> to vector<1x256xi32>
    %43 = arith.sitofp %42 : vector<1x256xi32> to vector<1x256xf32>
    %c15_i32 = arith.constant 15 : i32
    %44 = vector.broadcast %c15_i32 : i32 to vector<1x256xi32>
    %45 = arith.cmpi slt, %39, %44 : vector<1x256xi32>
    %46 = arith.extui %45 : vector<1x256xi1> to vector<1x256xi32>
    %47 = arith.sitofp %46 : vector<1x256xi32> to vector<1x256xf32>
    %cst_21 = arith.constant 0.000000e+00 : f32
    %48 = vector.broadcast %cst_21 : f32 to vector<32x128xf32>
    %49 = vector.extract_strided_slice %22 {offsets = [0, 0], sizes = [32, 256], strides = [1, 1]} : vector<32x512xf32> to vector<32x256xf32>
    %50 = tpu.concatenate %48, %49, %48 in 1 : vector<32x128xf32>, vector<32x256xf32>, vector<32x128xf32> -> vector<32x512xf32>
    %51 = vector.extract_strided_slice %3 {offsets = [0, 4], sizes = [32, 1], strides = [1, 1]} : vector<32x9xf32> to vector<32x1xf32>
    %52 = vector.broadcast %51 : vector<32x1xf32> to vector<32x256xf32>
    %53 = arith.mulf %49, %52 : vector<32x256xf32>
    %54 = vector.extract_strided_slice %50 {offsets = [0, 111], sizes = [32, 256], strides = [1, 1]} : vector<32x512xf32> to vector<32x256xf32>
    %55 = vector.broadcast %43 : vector<1x256xf32> to vector<32x256xf32>
    %56 = arith.mulf %54, %55 : vector<32x256xf32>
    %57 = vector.extract_strided_slice %3 {offsets = [0, 0], sizes = [32, 1], strides = [1, 1]} : vector<32x9xf32> to vector<32x1xf32>
    %58 = vector.broadcast %57 : vector<32x1xf32> to vector<32x256xf32>
    %59 = arith.mulf %56, %58 : vector<32x256xf32>
    %60 = arith.addf %53, %59 : vector<32x256xf32>
    %61 = vector.extract_strided_slice %50 {offsets = [0, 112], sizes = [32, 256], strides = [1, 1]} : vector<32x512xf32> to vector<32x256xf32>
    %62 = vector.extract_strided_slice %3 {offsets = [0, 1], sizes = [32, 1], strides = [1, 1]} : vector<32x9xf32> to vector<32x1xf32>
    %63 = vector.broadcast %62 : vector<32x1xf32> to vector<32x256xf32>
    %64 = arith.mulf %61, %63 : vector<32x256xf32>
    %65 = arith.addf %60, %64 : vector<32x256xf32>
    %66 = vector.extract_strided_slice %50 {offsets = [0, 113], sizes = [32, 256], strides = [1, 1]} : vector<32x512xf32> to vector<32x256xf32>
    %67 = vector.broadcast %47 : vector<1x256xf32> to vector<32x256xf32>
    %68 = arith.mulf %66, %67 : vector<32x256xf32>
    %69 = vector.extract_strided_slice %3 {offsets = [0, 2], sizes = [32, 1], strides = [1, 1]} : vector<32x9xf32> to vector<32x1xf32>
    %70 = vector.broadcast %69 : vector<32x1xf32> to vector<32x256xf32>
    %71 = arith.mulf %68, %70 : vector<32x256xf32>
    %72 = arith.addf %65, %71 : vector<32x256xf32>
    %73 = vector.extract_strided_slice %50 {offsets = [0, 127], sizes = [32, 256], strides = [1, 1]} : vector<32x512xf32> to vector<32x256xf32>
    %74 = vector.broadcast %43 : vector<1x256xf32> to vector<32x256xf32>
    %75 = arith.mulf %73, %74 : vector<32x256xf32>
    %76 = vector.extract_strided_slice %3 {offsets = [0, 3], sizes = [32, 1], strides = [1, 1]} : vector<32x9xf32> to vector<32x1xf32>
    %77 = vector.broadcast %76 : vector<32x1xf32> to vector<32x256xf32>
    %78 = arith.mulf %75, %77 : vector<32x256xf32>
    %79 = arith.addf %72, %78 : vector<32x256xf32>
    %80 = vector.extract_strided_slice %50 {offsets = [0, 129], sizes = [32, 256], strides = [1, 1]} : vector<32x512xf32> to vector<32x256xf32>
    %81 = vector.broadcast %47 : vector<1x256xf32> to vector<32x256xf32>
    %82 = arith.mulf %80, %81 : vector<32x256xf32>
    %83 = vector.extract_strided_slice %3 {offsets = [0, 5], sizes = [32, 1], strides = [1, 1]} : vector<32x9xf32> to vector<32x1xf32>
    %84 = vector.broadcast %83 : vector<32x1xf32> to vector<32x256xf32>
    %85 = arith.mulf %82, %84 : vector<32x256xf32>
    %86 = arith.addf %79, %85 : vector<32x256xf32>
    %87 = vector.extract_strided_slice %50 {offsets = [0, 143], sizes = [32, 256], strides = [1, 1]} : vector<32x512xf32> to vector<32x256xf32>
    %88 = vector.broadcast %43 : vector<1x256xf32> to vector<32x256xf32>
    %89 = arith.mulf %87, %88 : vector<32x256xf32>
    %90 = vector.extract_strided_slice %3 {offsets = [0, 6], sizes = [32, 1], strides = [1, 1]} : vector<32x9xf32> to vector<32x1xf32>
    %91 = vector.broadcast %90 : vector<32x1xf32> to vector<32x256xf32>
    %92 = arith.mulf %89, %91 : vector<32x256xf32>
    %93 = arith.addf %86, %92 : vector<32x256xf32>
    %94 = vector.extract_strided_slice %50 {offsets = [0, 144], sizes = [32, 256], strides = [1, 1]} : vector<32x512xf32> to vector<32x256xf32>
    %95 = vector.extract_strided_slice %3 {offsets = [0, 7], sizes = [32, 1], strides = [1, 1]} : vector<32x9xf32> to vector<32x1xf32>
    %96 = vector.broadcast %95 : vector<32x1xf32> to vector<32x256xf32>
    %97 = arith.mulf %94, %96 : vector<32x256xf32>
    %98 = arith.addf %93, %97 : vector<32x256xf32>
    %99 = vector.extract_strided_slice %50 {offsets = [0, 145], sizes = [32, 256], strides = [1, 1]} : vector<32x512xf32> to vector<32x256xf32>
    %100 = vector.broadcast %47 : vector<1x256xf32> to vector<32x256xf32>
    %101 = arith.mulf %99, %100 : vector<32x256xf32>
    %102 = vector.extract_strided_slice %3 {offsets = [0, 8], sizes = [32, 1], strides = [1, 1]} : vector<32x9xf32> to vector<32x1xf32>
    %103 = vector.broadcast %102 : vector<32x1xf32> to vector<32x256xf32>
    %104 = arith.mulf %101, %103 : vector<32x256xf32>
    %105 = arith.addf %98, %104 : vector<32x256xf32>
    %106 = vector.broadcast %5 : vector<32x1xf32> to vector<32x256xf32>
    %107 = arith.addf %105, %106 : vector<32x256xf32>
    %cst_22 = arith.constant 3.000000e+00 : f32
    %108 = vector.broadcast %cst_22 : f32 to vector<32x256xf32>
    %109 = arith.addf %107, %108 : vector<32x256xf32>
    %cst_23 = arith.constant 0.000000e+00 : f32
    %cst_24 = arith.constant 6.000000e+00 : f32
    %110 = vector.broadcast %cst_23 : f32 to vector<32x256xf32>
    %111 = arith.maximumf %110, %109 : vector<32x256xf32>
    %112 = vector.broadcast %cst_24 : f32 to vector<32x256xf32>
    %113 = arith.minimumf %112, %111 : vector<32x256xf32>
    %114 = arith.mulf %107, %113 : vector<32x256xf32>
    %cst_25 = arith.constant 6.000000e+00 : f32
    %115 = vector.broadcast %cst_25 : f32 to vector<32x256xf32>
    %116 = arith.divf %114, %115 : vector<32x256xf32>
    %cst_26 = arith.constant dense<0.000000e+00> : vector<8x256xf32>
    %117 = tpu.matmul %7, %116, %cst_26 {dimension_numbers = #tpu.dot_dimension_numbers<[1], [0], [0], [1], [0, 0, 1, 1], [], []>} : vector<8x32xf32>, vector<32x256xf32>, vector<8x256xf32> -> vector<8x256xf32>
    %cst_27 = arith.constant dense<0.000000e+00> : vector<8xf32>
    %118 = vector.multi_reduction <add>, %117, %cst_27 [1] : vector<8x256xf32> to vector<8xf32>
    %119 = vector.shape_cast %118 : vector<8xf32> to vector<8x1xf32>
    %cst_28 = arith.constant 2.560000e+02 : f32
    %120 = vector.broadcast %cst_28 : f32 to vector<8x1xf32>
    %121 = arith.divf %119, %120 : vector<8x1xf32>
    %122 = arith.addf %121, %9 : vector<8x1xf32>
    %cst_29 = arith.constant 0.000000e+00 : f32
    %123 = vector.broadcast %cst_29 : f32 to vector<8x1xf32>
    %124 = arith.maximumf %122, %123 : vector<8x1xf32>
    %125 = vector.shape_cast %124 : vector<8x1xf32> to vector<8x1xf32>
    %126 = vector.broadcast %125 : vector<8x1xf32> to vector<8x128xf32>
    %cst_30 = arith.constant dense<0.000000e+00> : vector<32x128xf32>
    %127 = tpu.matmul %2, %126, %cst_30 {dimension_numbers = #tpu.dot_dimension_numbers<[1], [0], [0], [1], [0, 0, 1, 1], [], []>} : vector<32x8xf32>, vector<8x128xf32>, vector<32x128xf32> -> vector<32x128xf32>
    %128 = vector.extract_strided_slice %127 {offsets = [0, 0], sizes = [32, 1], strides = [1, 1]} : vector<32x128xf32> to vector<32x1xf32>
    %129 = arith.addf %128, %6 : vector<32x1xf32>
    %cst_31 = arith.constant 3.000000e+00 : f32
    %130 = vector.broadcast %cst_31 : f32 to vector<32x1xf32>
    %131 = arith.addf %129, %130 : vector<32x1xf32>
    %cst_32 = arith.constant 0.000000e+00 : f32
    %cst_33 = arith.constant 6.000000e+00 : f32
    %132 = vector.broadcast %cst_32 : f32 to vector<32x1xf32>
    %133 = arith.maximumf %132, %131 : vector<32x1xf32>
    %134 = vector.broadcast %cst_33 : f32 to vector<32x1xf32>
    %135 = arith.minimumf %134, %133 : vector<32x1xf32>
    %cst_34 = arith.constant 6.000000e+00 : f32
    %136 = vector.broadcast %cst_34 : f32 to vector<32x1xf32>
    %137 = arith.divf %135, %136 : vector<32x1xf32>
    %138 = vector.broadcast %137 : vector<32x1xf32> to vector<32x256xf32>
    %139 = arith.mulf %116, %138 : vector<32x256xf32>
    %140 = vector.extract_strided_slice %22 {offsets = [0, 256], sizes = [32, 256], strides = [1, 1]} : vector<32x512xf32> to vector<32x256xf32>
    %141 = tpu.concatenate %48, %140, %48 in 1 : vector<32x128xf32>, vector<32x256xf32>, vector<32x128xf32> -> vector<32x512xf32>
    %142 = vector.extract_strided_slice %3 {offsets = [0, 4], sizes = [32, 1], strides = [1, 1]} : vector<32x9xf32> to vector<32x1xf32>
    %143 = vector.broadcast %142 : vector<32x1xf32> to vector<32x256xf32>
    %144 = arith.mulf %140, %143 : vector<32x256xf32>
    %145 = vector.extract_strided_slice %141 {offsets = [0, 111], sizes = [32, 256], strides = [1, 1]} : vector<32x512xf32> to vector<32x256xf32>
    %146 = vector.broadcast %43 : vector<1x256xf32> to vector<32x256xf32>
    %147 = arith.mulf %145, %146 : vector<32x256xf32>
    %148 = vector.extract_strided_slice %3 {offsets = [0, 0], sizes = [32, 1], strides = [1, 1]} : vector<32x9xf32> to vector<32x1xf32>
    %149 = vector.broadcast %148 : vector<32x1xf32> to vector<32x256xf32>
    %150 = arith.mulf %147, %149 : vector<32x256xf32>
    %151 = arith.addf %144, %150 : vector<32x256xf32>
    %152 = vector.extract_strided_slice %141 {offsets = [0, 112], sizes = [32, 256], strides = [1, 1]} : vector<32x512xf32> to vector<32x256xf32>
    %153 = vector.extract_strided_slice %3 {offsets = [0, 1], sizes = [32, 1], strides = [1, 1]} : vector<32x9xf32> to vector<32x1xf32>
    %154 = vector.broadcast %153 : vector<32x1xf32> to vector<32x256xf32>
    %155 = arith.mulf %152, %154 : vector<32x256xf32>
    %156 = arith.addf %151, %155 : vector<32x256xf32>
    %157 = vector.extract_strided_slice %141 {offsets = [0, 113], sizes = [32, 256], strides = [1, 1]} : vector<32x512xf32> to vector<32x256xf32>
    %158 = vector.broadcast %47 : vector<1x256xf32> to vector<32x256xf32>
    %159 = arith.mulf %157, %158 : vector<32x256xf32>
    %160 = vector.extract_strided_slice %3 {offsets = [0, 2], sizes = [32, 1], strides = [1, 1]} : vector<32x9xf32> to vector<32x1xf32>
    %161 = vector.broadcast %160 : vector<32x1xf32> to vector<32x256xf32>
    %162 = arith.mulf %159, %161 : vector<32x256xf32>
    %163 = arith.addf %156, %162 : vector<32x256xf32>
    %164 = vector.extract_strided_slice %141 {offsets = [0, 127], sizes = [32, 256], strides = [1, 1]} : vector<32x512xf32> to vector<32x256xf32>
    %165 = vector.broadcast %43 : vector<1x256xf32> to vector<32x256xf32>
    %166 = arith.mulf %164, %165 : vector<32x256xf32>
    %167 = vector.extract_strided_slice %3 {offsets = [0, 3], sizes = [32, 1], strides = [1, 1]} : vector<32x9xf32> to vector<32x1xf32>
    %168 = vector.broadcast %167 : vector<32x1xf32> to vector<32x256xf32>
    %169 = arith.mulf %166, %168 : vector<32x256xf32>
    %170 = arith.addf %163, %169 : vector<32x256xf32>
    %171 = vector.extract_strided_slice %141 {offsets = [0, 129], sizes = [32, 256], strides = [1, 1]} : vector<32x512xf32> to vector<32x256xf32>
    %172 = vector.broadcast %47 : vector<1x256xf32> to vector<32x256xf32>
    %173 = arith.mulf %171, %172 : vector<32x256xf32>
    %174 = vector.extract_strided_slice %3 {offsets = [0, 5], sizes = [32, 1], strides = [1, 1]} : vector<32x9xf32> to vector<32x1xf32>
    %175 = vector.broadcast %174 : vector<32x1xf32> to vector<32x256xf32>
    %176 = arith.mulf %173, %175 : vector<32x256xf32>
    %177 = arith.addf %170, %176 : vector<32x256xf32>
    %178 = vector.extract_strided_slice %141 {offsets = [0, 143], sizes = [32, 256], strides = [1, 1]} : vector<32x512xf32> to vector<32x256xf32>
    %179 = vector.broadcast %43 : vector<1x256xf32> to vector<32x256xf32>
    %180 = arith.mulf %178, %179 : vector<32x256xf32>
    %181 = vector.extract_strided_slice %3 {offsets = [0, 6], sizes = [32, 1], strides = [1, 1]} : vector<32x9xf32> to vector<32x1xf32>
    %182 = vector.broadcast %181 : vector<32x1xf32> to vector<32x256xf32>
    %183 = arith.mulf %180, %182 : vector<32x256xf32>
    %184 = arith.addf %177, %183 : vector<32x256xf32>
    %185 = vector.extract_strided_slice %141 {offsets = [0, 144], sizes = [32, 256], strides = [1, 1]} : vector<32x512xf32> to vector<32x256xf32>
    %186 = vector.extract_strided_slice %3 {offsets = [0, 7], sizes = [32, 1], strides = [1, 1]} : vector<32x9xf32> to vector<32x1xf32>
    %187 = vector.broadcast %186 : vector<32x1xf32> to vector<32x256xf32>
    %188 = arith.mulf %185, %187 : vector<32x256xf32>
    %189 = arith.addf %184, %188 : vector<32x256xf32>
    %190 = vector.extract_strided_slice %141 {offsets = [0, 145], sizes = [32, 256], strides = [1, 1]} : vector<32x512xf32> to vector<32x256xf32>
    %191 = vector.broadcast %47 : vector<1x256xf32> to vector<32x256xf32>
    %192 = arith.mulf %190, %191 : vector<32x256xf32>
    %193 = vector.extract_strided_slice %3 {offsets = [0, 8], sizes = [32, 1], strides = [1, 1]} : vector<32x9xf32> to vector<32x1xf32>
    %194 = vector.broadcast %193 : vector<32x1xf32> to vector<32x256xf32>
    %195 = arith.mulf %192, %194 : vector<32x256xf32>
    %196 = arith.addf %189, %195 : vector<32x256xf32>
    %197 = vector.broadcast %5 : vector<32x1xf32> to vector<32x256xf32>
    %198 = arith.addf %196, %197 : vector<32x256xf32>
    %cst_35 = arith.constant 3.000000e+00 : f32
    %199 = vector.broadcast %cst_35 : f32 to vector<32x256xf32>
    %200 = arith.addf %198, %199 : vector<32x256xf32>
    %cst_36 = arith.constant 0.000000e+00 : f32
    %cst_37 = arith.constant 6.000000e+00 : f32
    %201 = vector.broadcast %cst_36 : f32 to vector<32x256xf32>
    %202 = arith.maximumf %201, %200 : vector<32x256xf32>
    %203 = vector.broadcast %cst_37 : f32 to vector<32x256xf32>
    %204 = arith.minimumf %203, %202 : vector<32x256xf32>
    %205 = arith.mulf %198, %204 : vector<32x256xf32>
    %cst_38 = arith.constant 6.000000e+00 : f32
    %206 = vector.broadcast %cst_38 : f32 to vector<32x256xf32>
    %207 = arith.divf %205, %206 : vector<32x256xf32>
    %cst_39 = arith.constant dense<0.000000e+00> : vector<8x256xf32>
    %208 = tpu.matmul %7, %207, %cst_39 {dimension_numbers = #tpu.dot_dimension_numbers<[1], [0], [0], [1], [0, 0, 1, 1], [], []>} : vector<8x32xf32>, vector<32x256xf32>, vector<8x256xf32> -> vector<8x256xf32>
    %cst_40 = arith.constant dense<0.000000e+00> : vector<8xf32>
    %209 = vector.multi_reduction <add>, %208, %cst_40 [1] : vector<8x256xf32> to vector<8xf32>
    %210 = vector.shape_cast %209 : vector<8xf32> to vector<8x1xf32>
    %cst_41 = arith.constant 2.560000e+02 : f32
    %211 = vector.broadcast %cst_41 : f32 to vector<8x1xf32>
    %212 = arith.divf %210, %211 : vector<8x1xf32>
    %213 = arith.addf %212, %9 : vector<8x1xf32>
    %cst_42 = arith.constant 0.000000e+00 : f32
    %214 = vector.broadcast %cst_42 : f32 to vector<8x1xf32>
    %215 = arith.maximumf %213, %214 : vector<8x1xf32>
    %216 = vector.shape_cast %215 : vector<8x1xf32> to vector<8x1xf32>
    %217 = vector.broadcast %216 : vector<8x1xf32> to vector<8x128xf32>
    %cst_43 = arith.constant dense<0.000000e+00> : vector<32x128xf32>
    %218 = tpu.matmul %2, %217, %cst_43 {dimension_numbers = #tpu.dot_dimension_numbers<[1], [0], [0], [1], [0, 0, 1, 1], [], []>} : vector<32x8xf32>, vector<8x128xf32>, vector<32x128xf32> -> vector<32x128xf32>
    %219 = vector.extract_strided_slice %218 {offsets = [0, 0], sizes = [32, 1], strides = [1, 1]} : vector<32x128xf32> to vector<32x1xf32>
    %220 = arith.addf %219, %6 : vector<32x1xf32>
    %cst_44 = arith.constant 3.000000e+00 : f32
    %221 = vector.broadcast %cst_44 : f32 to vector<32x1xf32>
    %222 = arith.addf %220, %221 : vector<32x1xf32>
    %cst_45 = arith.constant 0.000000e+00 : f32
    %cst_46 = arith.constant 6.000000e+00 : f32
    %223 = vector.broadcast %cst_45 : f32 to vector<32x1xf32>
    %224 = arith.maximumf %223, %222 : vector<32x1xf32>
    %225 = vector.broadcast %cst_46 : f32 to vector<32x1xf32>
    %226 = arith.minimumf %225, %224 : vector<32x1xf32>
    %cst_47 = arith.constant 6.000000e+00 : f32
    %227 = vector.broadcast %cst_47 : f32 to vector<32x1xf32>
    %228 = arith.divf %226, %227 : vector<32x1xf32>
    %229 = vector.broadcast %228 : vector<32x1xf32> to vector<32x256xf32>
    %230 = arith.mulf %207, %229 : vector<32x256xf32>
    %231 = tpu.concatenate %139, %230 in 1 : vector<32x256xf32>, vector<32x256xf32> -> vector<32x512xf32>
    %cst_48 = arith.constant dense<0.000000e+00> : vector<8x512xf32>
    %232 = tpu.matmul %8, %231, %cst_48 {dimension_numbers = #tpu.dot_dimension_numbers<[1], [0], [0], [1], [0, 0, 1, 1], [], []>} : vector<8x32xf32>, vector<32x512xf32>, vector<8x512xf32> -> vector<8x512xf32>
    %233 = vector.broadcast %10 : vector<8x1xf32> to vector<8x512xf32>
    %234 = arith.addf %232, %233 : vector<8x512xf32>
    %235 = arith.addf %234, %0 : vector<8x512xf32>
    %c0_49 = arith.constant 0 : index
    %c0_50 = arith.constant 0 : index
    %236 = vector.load %arg4[%c0_49, %c0_50] : memref<8x512xf32, #tpu.memory_space<vmem>>, vector<8x512xf32>
    tpu.vector_store %arg4[%c0_49, %c0_50], %235 {strides = array<i32>} : memref<8x512xf32, #tpu.memory_space<vmem>>, vector<8x512xf32>,
    return
  }
  func.func @transform_0(%arg0: i32) -> (i32, i32) {
    %c0_i32 = arith.constant 0 : i32
    %c0_i32_0 = arith.constant 0 : i32
    %c0_i32_1 = arith.constant 0 : i32
    return %c0_i32, %c0_i32_0 : i32, i32
  }
  func.func @transform_1(%arg0: i32) -> (i32, i32) {
    %c0_i32 = arith.constant 0 : i32
    %c0_i32_0 = arith.constant 0 : i32
    %c0_i32_1 = arith.constant 0 : i32
    return %c0_i32, %c0_i32_0 : i32, i32
  }
  func.func @transform_2(%arg0: i32) -> (i32, i32) {
    %c0_i32 = arith.constant 0 : i32
    %c0_i32_0 = arith.constant 0 : i32
    %c0_i32_1 = arith.constant 0 : i32
    return %c0_i32, %c0_i32_0 : i32, i32
  }
  func.func @transform_3(%arg0: i32) -> (i32, i32) {
    %c0_i32 = arith.constant 0 : i32
    %c0_i32_0 = arith.constant 0 : i32
    %c0_i32_1 = arith.constant 0 : i32
    return %c0_i32, %c0_i32_0 : i32, i32
  }
}

</mosaic_0001>

<llo_original>
// kernel: tpu_custom_call.1
$region0: #{tpu_custom_call.1}
  #allocation0 [shape = 'u32[]', space=smem, size = 0x4, offset = 0x4, fixed_abs, tag = 'smem constant byte address 0x4 - core index']
  #allocation1 [shape = 'u32[144,128]{1,0:T(1,128)}', space=vmem, size = 0x12000, scoped, tag = 'internal scratch']
  %s0 = inlined_call_operand.hbm [shape: f32[8,512], index: 0, kind: input, shape index: {}]
  %s1 = inlined_call_operand.hbm [shape: f32[32,128], index: 1, kind: input, shape index: {}]
  %s2 = inlined_call_operand.hbm [shape: f32[8,128], index: 2, kind: input, shape index: {}]
  %s3 = inlined_call_operand.hbm [shape: f32[8,512], index: 3, kind: output, shape index: {}]
  %s4 = sld [smem:[#allocation0]]
  $region34: #{tpu_custom_call.1} parent=0
    _
  %s6 = ssub.s32 1, %s4
  %s7 = scalar_select 0, %s6, %s4
  $region1: #{tpu_custom_call.1} parent=0
    #allocation2 [shape = 'u8[16384]{0}', space=vmem, size = 0x4000, scoped, tag = 'input window, operand 0, single buffered']
    #allocation3 [shape = 's32[1]{0}', space=sflag, size = 0x4, scoped, tag = 'scoped memory for tpu_custom_call.1']
    #allocation4 [shape = 's32[1]{0}', space=sflag, size = 0x4, scoped, tag = 'scoped memory for tpu_custom_call.1']
    #allocation5 [shape = 'u8[16384]{0}', space=vmem, size = 0x4000, scoped, tag = 'input window, operand 1, single buffered']
    #allocation6 [shape = 's32[1]{0}', space=sflag, size = 0x4, scoped, tag = 'scoped memory for tpu_custom_call.1']
    #allocation7 [shape = 'u8[4096]{0}', space=vmem, size = 0x1000, scoped, tag = 'input window, operand 2, single buffered']
    #allocation8 [shape = 'u8[16384]{0}', space=vmem, size = 0x4000, scoped, tag = 'output window, operand 0, single buffered']
    %8 = vsyncpa [#allocation3], 0
    %9 = vsyncpa [#allocation6], 0
    %10 = vsyncpa [#allocation4], 0
    // Predicated region
    $region2: #{tpu_custom_call.1} parent=1 // pred_check
      _
    $region3: #{tpu_custom_call.1} parent=1 // pred_check_branch
      %12 = sbr.rel (0) target = $region5
    $region4: #{tpu_custom_call.1} parent=1 // pred_region
      %s14 = ssub.s32 512, 512
      %15 = vsyncadd [#allocation3], %s14
      %s17 = sshll.u32 [#allocation2], 4
      %s18 = int_to_ptr.vmem [resolvable:$true] %s17
      %20 = dma.hbm_to_vmem [thread:$0]  %s0, 512, %s18, [#allocation3]
    $region5: #{tpu_custom_call.1} parent=1 // pred_fallthru
      _
    // Predicated region
    $region6: #{tpu_custom_call.1} parent=1 // pred_check
      _
    $region7: #{tpu_custom_call.1} parent=1 // pred_check_branch
      %22 = sbr.rel (0) target = $region9
    $region8: #{tpu_custom_call.1} parent=1 // pred_region
      %s24 = ssub.s32 512, 512
      %25 = vsyncadd [#allocation6], %s24
      %s26 = sshll.u32 [#allocation5], 4
      %s27 = int_to_ptr.vmem [resolvable:$true] %s26
      %32 = dma.hbm_to_vmem [thread:$0]  %s1, 512, %s27, [#allocation6], 128, 128, 8
    $region9: #{tpu_custom_call.1} parent=1 // pred_fallthru
      _
    // Predicated region
    $region10: #{tpu_custom_call.1} parent=1 // pred_check
      _
    $region11: #{tpu_custom_call.1} parent=1 // pred_check_branch
      %34 = sbr.rel (0) target = $region13
    $region12: #{tpu_custom_call.1} parent=1 // pred_region
      %s36 = ssub.s32 128, 128
      %37 = vsyncadd [#allocation6], %s36
      %s39 = sshll.u32 [#allocation7], 4
      %s40 = int_to_ptr.vmem [resolvable:$true] %s39
      %42 = dma.hbm_to_vmem [thread:$0]  %s2, 128, %s40, [#allocation6]
    $region13: #{tpu_custom_call.1} parent=1 // pred_fallthru
      _
    // Predicated region
    $region14: #{tpu_custom_call.1} parent=1 // pred_check
      _
    $region15: #{tpu_custom_call.1} parent=1 // pred_check_branch
      %44 = sbr.rel (0) target = $region17
    $region16: #{tpu_custom_call.1} parent=1 // pred_region
      %45 = dma.done [#allocation3], 512
    $region17: #{tpu_custom_call.1} parent=1 // pred_fallthru
      _
    // Predicated region
    $region18: #{tpu_custom_call.1} parent=1 // pred_check
      _
    $region19: #{tpu_custom_call.1} parent=1 // pred_check_branch
      %47 = sbr.rel (0) target = $region21
    $region20: #{tpu_custom_call.1} parent=1 // pred_region
      %48 = dma.done [#allocation6], 512
    $region21: #{tpu_custom_call.1} parent=1 // pred_fallthru
      _
    // Predicated region
    $region22: #{tpu_custom_call.1} parent=1 // pred_check
      _
    $region23: #{tpu_custom_call.1} parent=1 // pred_check_branch
      %50 = sbr.rel (0) target = $region25
    $region24: #{tpu_custom_call.1} parent=1 // pred_region
      %51 = dma.done [#allocation6], 128
    $region25: #{tpu_custom_call.1} parent=1 // pred_fallthru
      _
    %v52 = vld [vmem:[#allocation2] sm:$0xff]
    %v53 = vld [vmem:[#allocation2 + $0x8] sm:$0xff]
    %v54 = vld [vmem:[#allocation2 + $0x10] sm:$0xff]
    %v55 = vld [vmem:[#allocation2 + $0x18] sm:$0xff]
    %v56 = vld [vmem:[#allocation5] sm:$0xff]
    %v57 = vld [vmem:[#allocation5 + $0x8] sm:$0xff]
    %v58 = vld [vmem:[#allocation5 + $0x10] sm:$0xff]
    %v59 = vld [vmem:[#allocation5 + $0x18] sm:$0xff]
    %v60 = vld [vmem:[#allocation7] sm:$0xff]
    %62 = vset.pattern.permute.xlu0 25
    %63 = vperm.xlu0 %62, %v56
    %v64 = vpop.permute.xlu0 %63
    %67 = vset.pattern.permute.xlu0 25
    %68 = vperm.xlu0 %67, %v57
    %v69 = vpop.permute.xlu0 %68
    %72 = vset.pattern.permute.xlu0 25
    %73 = vperm.xlu0 %72, %v58
    %v74 = vpop.permute.xlu0 %73
    %77 = vset.pattern.permute.xlu0 25
    %78 = vperm.xlu0 %77, %v59
    %v79 = vpop.permute.xlu0 %78
    %vm81 = vcmask 64512
    %v82 = vsel %vm81, %v56, 0
    %v84 = vsel %vm81, %v57, 0
    %v86 = vsel %vm81, %v58, 0
    %v88 = vsel %vm81, %v59, 0
    %90 = vmatprep.subr.mxu0 %v53
    %91 = vmatpush1.msra.mxu0 %v52
    %92 = vmatprep.subr.mxu0 0.0
    %93 = vmatpush1.msra.mxu0 0.0
    %94 = vmatprep.subr.mxu0 0.0
    %95 = vmatpush1.msra.mxu0 0.0
    %96 = vmatprep.subr.mxu0 0.0
    %97 = vmatpush1.msra.mxu0 0.0
    %98 = vmatprep.subr.mxu0 0.0
    %99 = vmatpush1.msra.mxu0 0.0
    %100 = vmatprep.subr.mxu0 0.0
    %101 = vmatpush1.msra.mxu0 0.0
    %102 = vmatprep.subr.mxu0 0.0
    %103 = vmatpush1.msra.mxu0 0.0
    %104 = vmatprep.subr.mxu0 0.0
    %105 = vmatpush1.msra.mxu0 0.0
    %106 = vmatprep.subr.mxu0 0.0
    %107 = vmatpush1.msra.mxu0 0.0
    %108 = vmatprep.subr.mxu0 0.0
    %109 = vmatpush1.msra.mxu0 0.0
    %110 = vmatprep.subr.mxu0 0.0
    %111 = vmatpush1.msra.mxu0 0.0
    %112 = vmatprep.subr.mxu0 0.0
    %113 = vmatpush1.msra.mxu0 0.0
    %114 = vmatprep.subr.mxu0 0.0
    %115 = vmatpush1.msra.mxu0 0.0
    %116 = vmatprep.subr.mxu0 0.0
    %117 = vmatpush1.msra.mxu0 0.0
    %118 = vmatprep.subr.mxu0 0.0
    %119 = vmatpush1.msra.mxu0 0.0
    %120 = vmatprep.subr.mxu0 0.0
    %121 = vmatpush1.msra.mxu0 0.0
    %122 = vmatprep.subr.mxu0 0.0
    %123 = vmatpush1.msra.mxu0 0.0
    %124 = vmatprep.subr.mxu0 0.0
    %125 = vmatpush1.msra.mxu0 0.0
    %126 = vmatprep.subr.mxu0 0.0
    %127 = vmatpush1.msra.mxu0 0.0
    %128 = vmatprep.subr.mxu0 0.0
    %129 = vmatpush1.msra.mxu0 0.0
    %130 = vmatprep.subr.mxu0 0.0
    %131 = vmatpush1.msra.mxu0 0.0
    %132 = vmatprep.subr.mxu0 0.0
    %133 = vmatpush1.msra.mxu0 0.0
    %134 = vmatprep.subr.mxu0 0.0
    %135 = vmatpush1.msra.mxu0 0.0
    %136 = vmatprep.subr.mxu0 0.0
    %137 = vmatpush1.msra.mxu0 0.0
    %138 = vmatprep.subr.mxu0 0.0
    %139 = vmatpush1.msra.mxu0 0.0
    %140 = vmatprep.subr.mxu0 0.0
    %141 = vmatpush1.msra.mxu0 0.0
    %142 = vmatprep.subr.mxu0 0.0
    %143 = vmatpush1.msra.mxu0 0.0
    %144 = vmatprep.subr.mxu0 0.0
    %145 = vmatpush1.msra.mxu0 0.0
    %146 = vmatprep.subr.mxu0 0.0
    %147 = vmatpush1.msra.mxu0 0.0
    %148 = vmatprep.subr.mxu0 0.0
    %149 = vmatpush1.msra.mxu0 0.0
    %150 = vmatprep.subr.mxu0 0.0
    %151 = vmatpush1.msra.mxu0 0.0
    %152 = vmatprep.subr.mxu0 0.0
    %153 = vmatpush1.msra.mxu0 0.0
    %154 = vmatprep.mubr.f32.mxu0 0.0
    %155 = vmatmul.mubr.f32.gmra.mrb[0].mxu0 %v82
    %v156 = vpop.f32.mrb[0].mxu0
    %v157 = vadd.f32 %v64, %v156
    %v158 = vpop.f32.mrb[0].mxu0
    %v159 = vadd.f32 %v64, %v158
    %160 = vmatprep.mubr.f32.mxu0 0.0
    %161 = vmatmul.mubr.f32.gmra.mrb[0].mxu0 %v84
    %v162 = vpop.f32.mrb[0].mxu0
    %v163 = vadd.f32 %v69, %v162
    %v164 = vpop.f32.mrb[0].mxu0
    %v165 = vadd.f32 %v69, %v164
    %166 = vmatprep.mubr.f32.mxu0 0.0
    %167 = vmatmul.mubr.f32.gmra.mrb[0].mxu0 %v86
    %v168 = vpop.f32.mrb[0].mxu0
    %v169 = vadd.f32 %v74, %v168
    %v170 = vpop.f32.mrb[0].mxu0
    %v171 = vadd.f32 %v74, %v170
    %172 = vmatprep.mubr.f32.mxu0 0.0
    %173 = vmatmul.mubr.f32.gmra.mrb[0].mxu0 %v88
    %v174 = vpop.f32.mrb[0].mxu0
    %v175 = vadd.f32 %v79, %v174
    %v176 = vpop.f32.mrb[0].mxu0
    %v177 = vadd.f32 %v79, %v176
    %178 = vdwg.mxu0
    %179 = vmatprep.subr.mxu0 %v55
    %180 = vmatpush1.msra.mxu0 %v54
    %181 = vmatprep.subr.mxu0 0.0
    %182 = vmatpush1.msra.mxu0 0.0
    %183 = vmatprep.subr.mxu0 0.0
    %184 = vmatpush1.msra.mxu0 0.0
    %185 = vmatprep.subr.mxu0 0.0
    %186 = vmatpush1.msra.mxu0 0.0
    %187 = vmatprep.subr.mxu0 0.0
    %188 = vmatpush1.msra.mxu0 0.0
    %189 = vmatprep.subr.mxu0 0.0
    %190 = vmatpush1.msra.mxu0 0.0
    %191 = vmatprep.subr.mxu0 0.0
    %192 = vmatpush1.msra.mxu0 0.0
    %193 = vmatprep.subr.mxu0 0.0
    %194 = vmatpush1.msra.mxu0 0.0
    %195 = vmatprep.subr.mxu0 0.0
    %196 = vmatpush1.msra.mxu0 0.0
    %197 = vmatprep.subr.mxu0 0.0
    %198 = vmatpush1.msra.mxu0 0.0
    %199 = vmatprep.subr.mxu0 0.0
    %200 = vmatpush1.msra.mxu0 0.0
    %201 = vmatprep.subr.mxu0 0.0
    %202 = vmatpush1.msra.mxu0 0.0
    %203 = vmatprep.subr.mxu0 0.0
    %204 = vmatpush1.msra.mxu0 0.0
    %205 = vmatprep.subr.mxu0 0.0
    %206 = vmatpush1.msra.mxu0 0.0
    %207 = vmatprep.subr.mxu0 0.0
    %208 = vmatpush1.msra.mxu0 0.0
    %209 = vmatprep.subr.mxu0 0.0
    %210 = vmatpush1.msra.mxu0 0.0
    %211 = vmatprep.subr.mxu0 0.0
    %212 = vmatpush1.msra.mxu0 0.0
    %213 = vmatprep.subr.mxu0 0.0
    %214 = vmatpush1.msra.mxu0 0.0
    %215 = vmatprep.subr.mxu0 0.0
    %216 = vmatpush1.msra.mxu0 0.0
    %217 = vmatprep.subr.mxu0 0.0
    %218 = vmatpush1.msra.mxu0 0.0
    %219 = vmatprep.subr.mxu0 0.0
    %220 = vmatpush1.msra.mxu0 0.0
    %221 = vmatprep.subr.mxu0 0.0
    %222 = vmatpush1.msra.mxu0 0.0
    %223 = vmatprep.subr.mxu0 0.0
    %224 = vmatpush1.msra.mxu0 0.0
    %225 = vmatprep.subr.mxu0 0.0
    %226 = vmatpush1.msra.mxu0 0.0
    %227 = vmatprep.subr.mxu0 0.0
    %228 = vmatpush1.msra.mxu0 0.0
    %229 = vmatprep.subr.mxu0 0.0
    %230 = vmatpush1.msra.mxu0 0.0
    %231 = vmatprep.subr.mxu0 0.0
    %232 = vmatpush1.msra.mxu0 0.0
    %233 = vmatprep.subr.mxu0 0.0
    %234 = vmatpush1.msra.mxu0 0.0
    %235 = vmatprep.subr.mxu0 0.0
    %236 = vmatpush1.msra.mxu0 0.0
    %237 = vmatprep.subr.mxu0 0.0
    %238 = vmatpush1.msra.mxu0 0.0
    %239 = vmatprep.subr.mxu0 0.0
    %240 = vmatpush1.msra.mxu0 0.0
    %241 = vmatprep.subr.mxu0 0.0
    %242 = vmatpush1.msra.mxu0 0.0
    %243 = vmatprep.mubr.f32.mxu0 0.0
    %244 = vmatmul.mubr.f32.gmra.mrb[0].mxu0 %v82
    %v245 = vpop.f32.mrb[0].mxu0
    %v246 = vadd.f32 %v64, %v245
    %v247 = vpop.f32.mrb[0].mxu0
    %v248 = vadd.f32 %v64, %v247
    %249 = vmatprep.mubr.f32.mxu0 0.0
    %250 = vmatmul.mubr.f32.gmra.mrb[0].mxu0 %v84
    %v251 = vpop.f32.mrb[0].mxu0
    %v252 = vadd.f32 %v69, %v251
    %v253 = vpop.f32.mrb[0].mxu0
    %v254 = vadd.f32 %v69, %v253
    %255 = vmatprep.mubr.f32.mxu0 0.0
    %256 = vmatmul.mubr.f32.gmra.mrb[0].mxu0 %v86
    %v257 = vpop.f32.mrb[0].mxu0
    %v258 = vadd.f32 %v74, %v257
    %v259 = vpop.f32.mrb[0].mxu0
    %v260 = vadd.f32 %v74, %v259
    %261 = vmatprep.mubr.f32.mxu0 0.0
    %262 = vmatmul.mubr.f32.gmra.mrb[0].mxu0 %v88
    %v263 = vpop.f32.mrb[0].mxu0
    %v264 = vadd.f32 %v79, %v263
    %v265 = vpop.f32.mrb[0].mxu0
    %v266 = vadd.f32 %v79, %v265
    %267 = vdwg.mxu0
    %v268 = vadd.f32 %v157, 3.0
    %v269 = vadd.f32 %v159, 3.0
    %v270 = vadd.f32 %v246, 3.0
    %v271 = vadd.f32 %v248, 3.0
    %v272 = vadd.f32 %v163, 3.0
    %v273 = vadd.f32 %v165, 3.0
    %v274 = vadd.f32 %v252, 3.0
    %v275 = vadd.f32 %v254, 3.0
    %v276 = vadd.f32 %v169, 3.0
    %v277 = vadd.f32 %v171, 3.0
    %v278 = vadd.f32 %v258, 3.0
    %v279 = vadd.f32 %v260, 3.0
    %v280 = vadd.f32 %v175, 3.0
    %v281 = vadd.f32 %v177, 3.0
    %v282 = vadd.f32 %v264, 3.0
    %v283 = vadd.f32 %v266, 3.0
    %v284 = vmax.f32 %v268, 0.0
    %v285 = vmax.f32 %v269, 0.0
    %v286 = vmax.f32 %v270, 0.0
    %v287 = vmax.f32 %v271, 0.0
    %v288 = vmax.f32 %v272, 0.0
    %v289 = vmax.f32 %v273, 0.0
    %v290 = vmax.f32 %v274, 0.0
    %v291 = vmax.f32 %v275, 0.0
    %v292 = vmax.f32 %v276, 0.0
    %v293 = vmax.f32 %v277, 0.0
    %v294 = vmax.f32 %v278, 0.0
    %v295 = vmax.f32 %v279, 0.0
    %v296 = vmax.f32 %v280, 0.0
    %v297 = vmax.f32 %v281, 0.0
    %v298 = vmax.f32 %v282, 0.0
    %v299 = vmax.f32 %v283, 0.0
    %v300 = vmin.f32 %v284, 6.0
    %v301 = vmin.f32 %v285, 6.0
    %v302 = vmin.f32 %v286, 6.0
    %v303 = vmin.f32 %v287, 6.0
    %v304 = vmin.f32 %v288, 6.0
    %v305 = vmin.f32 %v289, 6.0
    %v306 = vmin.f32 %v290, 6.0
    %v307 = vmin.f32 %v291, 6.0
    %v308 = vmin.f32 %v292, 6.0
    %v309 = vmin.f32 %v293, 6.0
    %v310 = vmin.f32 %v294, 6.0
    %v311 = vmin.f32 %v295, 6.0
    %v312 = vmin.f32 %v296, 6.0
    %v313 = vmin.f32 %v297, 6.0
    %v314 = vmin.f32 %v298, 6.0
    %v315 = vmin.f32 %v299, 6.0
    %v316 = vmul.f32 %v157, %v300
    %v317 = vmul.f32 %v159, %v301
    %v318 = vmul.f32 %v246, %v302
    %v319 = vmul.f32 %v248, %v303
    %v320 = vmul.f32 %v163, %v304
    %v321 = vmul.f32 %v165, %v305
    %v322 = vmul.f32 %v252, %v306
    %v323 = vmul.f32 %v254, %v307
    %v324 = vmul.f32 %v169, %v308
    %v325 = vmul.f32 %v171, %v309
    %v326 = vmul.f32 %v258, %v310
    %v327 = vmul.f32 %v260, %v311
    %v328 = vmul.f32 %v175, %v312
    %v329 = vmul.f32 %v177, %v313
    %v330 = vmul.f32 %v264, %v314
    %v331 = vmul.f32 %v266, %v315
    %v332 = vrcp.pop 6.0
    %v333 = vmul.f32 %v316, %v332
    %v334 = vmul.f32 %v317, %v332
    %v335 = vmul.f32 %v318, %v332
    %v336 = vmul.f32 %v319, %v332
    %v337 = vmul.f32 %v320, %v332
    %v338 = vmul.f32 %v321, %v332
    %v339 = vmul.f32 %v322, %v332
    %v340 = vmul.f32 %v323, %v332
    %v341 = vmul.f32 %v324, %v332
    %v342 = vmul.f32 %v325, %v332
    %v343 = vmul.f32 %v326, %v332
    %v344 = vmul.f32 %v327, %v332
    %v345 = vmul.f32 %v328, %v332
    %v346 = vmul.f32 %v329, %v332
    %v347 = vmul.f32 %v330, %v332
    %v348 = vmul.f32 %v331, %v332
    %v349 = vlaneseq
    %v350 = vand.u32 %v349, 127
    %v351 = vadd.s32 %v350, 128
    %vm352 = vcmp.lt.s32.totalorder %v350, 0
    %v353 = vsub.s32 0, %v350
    %v354 = vsel %vm352, %v353, %v350
    %v355 = vshrl.u32 %v354, 4
    %v356 = vand.u32 %v354, 15
    %v357 = vsub.s32 0, %v356
    %v358 = vsel %vm352, %v357, %v356
    %vm359 = vcmp.lt.s32.totalorder %v351, 0
    %v360 = vsub.s32 0, %v351
    %v361 = vsel %vm359, %v360, %v351
    %v362 = vshrl.u32 %v361, 4
    %v363 = vand.u32 %v361, 15
    %v364 = vsub.s32 0, %v363
    %v365 = vsel %vm359, %v364, %v363
    %vm366 = vcmp.ne.s32.totalorder %v358, 0
    %vm367 = vcmp.ne.s32.totalorder %v365, 0
    %vm368 = vcmp.lt.s32.totalorder %v358, 0
    %vm369 = vcmp.lt.s32.totalorder %v365, 0
    %vm370 = vmand %vm368, %vm366
    %vm371 = vmand %vm369, %vm367
    %v372 = vadd.s32 %v358, 16
    %v373 = vadd.s32 %v365, 16
    %v374 = vsel %vm370, %v372, %v358
    %v375 = vsel %vm371, %v373, %v365
    %vm376 = vcmp.gt.s32.totalorder %v374, 0
    %vm377 = vcmp.gt.s32.totalorder %v375, 0
    %v378 = vsel %vm376, 1, 0
    %v379 = vsel %vm377, 1, 0
    %v380 = vcvt.s32.f32 %v378
    %v381 = vcvt.s32.f32 %v379
    %vm382 = vcmp.lt.s32.totalorder %v374, 15
    %vm383 = vcmp.lt.s32.totalorder %v375, 15
    %v384 = vsel %vm382, 1, 0
    %v385 = vsel %vm383, 1, 0
    %v386 = vcvt.s32.f32 %v384
    %v387 = vcvt.s32.f32 %v385
    %388 = vset.pattern.permute.xlu0 20
    %389 = vperm.xlu0 %388, %v56
    %v390 = vpop.permute.xlu0 %389
    %392 = vset.pattern.permute.xlu0 20
    %393 = vperm.xlu0 %392, %v57
    %v394 = vpop.permute.xlu0 %393
    %396 = vset.pattern.permute.xlu0 20
    %397 = vperm.xlu0 %396, %v58
    %v398 = vpop.permute.xlu0 %397
    %400 = vset.pattern.permute.xlu0 20
    %401 = vperm.xlu0 %400, %v59
    %v402 = vpop.permute.xlu0 %401
    %v404 = vmul.f32 %v333, %v390
    %v405 = vmul.f32 %v334, %v390
    %v406 = vmul.f32 %v337, %v394
    %v407 = vmul.f32 %v338, %v394
    %v408 = vmul.f32 %v341, %v398
    %v409 = vmul.f32 %v342, %v398
    %v410 = vmul.f32 %v345, %v402
    %v411 = vmul.f32 %v346, %v402
    %414 = vrot.lane.b32.xlu0 %v380, 111
    %v415 = vpop.permute.xlu0 %414
    %416 = vrot.lane.b32.xlu0 %v381, 111
    %v417 = vpop.permute.xlu0 %416
    %vm418 = vcmask 908288
    %v419 = vsel %vm418, %v415, %v417
    %v423 = vmul.f32 %v415, 0.0
    %v424 = vmul.f32 %v333, %v419
    %v425 = vmul.f32 %v334, %v417
    %v426 = vmul.f32 %v337, %v419
    %v427 = vmul.f32 %v338, %v417
    %v428 = vmul.f32 %v341, %v419
    %v429 = vmul.f32 %v342, %v417
    %v430 = vmul.f32 %v345, %v419
    %v431 = vmul.f32 %v346, %v417
    %432 = vset.pattern.permute.xlu0 16
    %433 = vperm.xlu0 %432, %v56
    %v434 = vpop.permute.xlu0 %433
    %436 = vset.pattern.permute.xlu0 16
    %437 = vperm.xlu0 %436, %v57
    %v438 = vpop.permute.xlu0 %437
    %440 = vset.pattern.permute.xlu0 16
    %441 = vperm.xlu0 %440, %v58
    %v442 = vpop.permute.xlu0 %441
    %444 = vset.pattern.permute.xlu0 16
    %445 = vperm.xlu0 %444, %v59
    %v446 = vpop.permute.xlu0 %445
    %v448 = vmul.f32 %v423, %v434
    %v449 = vmul.f32 %v424, %v434
    %v450 = vmul.f32 %v425, %v434
    %v451 = vmul.f32 %v423, %v438
    %v452 = vmul.f32 %v426, %v438
    %v453 = vmul.f32 %v427, %v438
    %v454 = vmul.f32 %v423, %v442
    %v455 = vmul.f32 %v428, %v442
    %v456 = vmul.f32 %v429, %v442
    %v457 = vmul.f32 %v423, %v446
    %v458 = vmul.f32 %v430, %v446
    %v459 = vmul.f32 %v431, %v446
    %472 = vrot.lane.b32.xlu0 %v448, 17
    %v473 = vpop.permute.xlu0 %472
    %474 = vrot.lane.b32.xlu0 %v449, 17
    %v475 = vpop.permute.xlu0 %474
    %476 = vrot.lane.b32.xlu0 %v450, 17
    %v477 = vpop.permute.xlu0 %476
    %478 = vrot.lane.b32.xlu0 %v451, 17
    %v479 = vpop.permute.xlu0 %478
    %480 = vrot.lane.b32.xlu0 %v452, 17
    %v481 = vpop.permute.xlu0 %480
    %482 = vrot.lane.b32.xlu0 %v453, 17
    %v483 = vpop.permute.xlu0 %482
    %484 = vrot.lane.b32.xlu0 %v454, 17
    %v485 = vpop.permute.xlu0 %484
    %486 = vrot.lane.b32.xlu0 %v455, 17
    %v487 = vpop.permute.xlu0 %486
    %488 = vrot.lane.b32.xlu0 %v456, 17
    %v489 = vpop.permute.xlu0 %488
    %490 = vrot.lane.b32.xlu0 %v457, 17
    %v491 = vpop.permute.xlu0 %490
    %492 = vrot.lane.b32.xlu0 %v458, 17
    %v493 = vpop.permute.xlu0 %492
    %494 = vrot.lane.b32.xlu0 %v459, 17
    %v495 = vpop.permute.xlu0 %494
    %vm496 = vcmask 138240
    %v497 = vsel %vm496, %v473, %v475
    %v498 = vsel %vm496, %v475, %v477
    %v499 = vsel %vm496, %v479, %v481
    %v500 = vsel %vm496, %v481, %v483
    %v501 = vsel %vm496, %v485, %v487
    %v502 = vsel %vm496, %v487, %v489
    %v503 = vsel %vm496, %v491, %v493
    %v504 = vsel %vm496, %v493, %v495
    %v513 = vadd.f32 %v404, %v497
    %v514 = vadd.f32 %v405, %v498
    %v515 = vadd.f32 %v406, %v499
    %v516 = vadd.f32 %v407, %v500
    %v517 = vadd.f32 %v408, %v501
    %v518 = vadd.f32 %v409, %v502
    %v519 = vadd.f32 %v410, %v503
    %v520 = vadd.f32 %v411, %v504
    %521 = vset.pattern.permute.xlu0 17
    %522 = vperm.xlu0 %521, %v56
    %v523 = vpop.permute.xlu0 %522
    %525 = vset.pattern.permute.xlu0 17
    %526 = vperm.xlu0 %525, %v57
    %v527 = vpop.permute.xlu0 %526
    %529 = vset.pattern.permute.xlu0 17
    %530 = vperm.xlu0 %529, %v58
    %v531 = vpop.permute.xlu0 %530
    %533 = vset.pattern.permute.xlu0 17
    %534 = vperm.xlu0 %533, %v59
    %v535 = vpop.permute.xlu0 %534
    %v537 = vmul.f32 %v523, 0.0
    %v538 = vmul.f32 %v333, %v523
    %v539 = vmul.f32 %v334, %v523
    %v540 = vmul.f32 %v527, 0.0
    %v541 = vmul.f32 %v337, %v527
    %v542 = vmul.f32 %v338, %v527
    %v543 = vmul.f32 %v531, 0.0
    %v544 = vmul.f32 %v341, %v531
    %v545 = vmul.f32 %v342, %v531
    %v546 = vmul.f32 %v535, 0.0
    %v547 = vmul.f32 %v345, %v535
    %v548 = vmul.f32 %v346, %v535
    %561 = vrot.lane.b32.xlu0 %v537, 16
    %v562 = vpop.permute.xlu0 %561
    %563 = vrot.lane.b32.xlu0 %v538, 16
    %v564 = vpop.permute.xlu0 %563
    %565 = vrot.lane.b32.xlu0 %v539, 16
    %v566 = vpop.permute.xlu0 %565
    %567 = vrot.lane.b32.xlu0 %v540, 16
    %v568 = vpop.permute.xlu0 %567
    %569 = vrot.lane.b32.xlu0 %v541, 16
    %v570 = vpop.permute.xlu0 %569
    %571 = vrot.lane.b32.xlu0 %v542, 16
    %v572 = vpop.permute.xlu0 %571
    %573 = vrot.lane.b32.xlu0 %v543, 16
    %v574 = vpop.permute.xlu0 %573
    %575 = vrot.lane.b32.xlu0 %v544, 16
    %v576 = vpop.permute.xlu0 %575
    %577 = vrot.lane.b32.xlu0 %v545, 16
    %v578 = vpop.permute.xlu0 %577
    %579 = vrot.lane.b32.xlu0 %v546, 16
    %v580 = vpop.permute.xlu0 %579
    %581 = vrot.lane.b32.xlu0 %v547, 16
    %v582 = vpop.permute.xlu0 %581
    %583 = vrot.lane.b32.xlu0 %v548, 16
    %v584 = vpop.permute.xlu0 %583
    %vm585 = vcmask 130048
    %v586 = vsel %vm585, %v562, %v564
    %v587 = vsel %vm585, %v564, %v566
    %v588 = vsel %vm585, %v568, %v570
    %v589 = vsel %vm585, %v570, %v572
    %v590 = vsel %vm585, %v574, %v576
    %v591 = vsel %vm585, %v576, %v578
    %v592 = vsel %vm585, %v580, %v582
    %v593 = vsel %vm585, %v582, %v584
    %v602 = vadd.f32 %v513, %v586
    %v603 = vadd.f32 %v514, %v587
    %v604 = vadd.f32 %v515, %v588
    %v605 = vadd.f32 %v516, %v589
    %v606 = vadd.f32 %v517, %v590
    %v607 = vadd.f32 %v518, %v591
    %v608 = vadd.f32 %v519, %v592
    %v609 = vadd.f32 %v520, %v593
    %612 = vrot.lane.b32.xlu0 %v386, 113
    %v613 = vpop.permute.xlu0 %612
    %614 = vrot.lane.b32.xlu0 %v387, 113
    %v615 = vpop.permute.xlu0 %614
    %vm616 = vcmask 924672
    %v617 = vsel %vm616, %v613, %v615
    %v621 = vmul.f32 %v613, 0.0
    %v622 = vmul.f32 %v333, %v617
    %v623 = vmul.f32 %v334, %v615
    %v624 = vmul.f32 %v337, %v617
    %v625 = vmul.f32 %v338, %v615
    %v626 = vmul.f32 %v341, %v617
    %v627 = vmul.f32 %v342, %v615
    %v628 = vmul.f32 %v345, %v617
    %v629 = vmul.f32 %v346, %v615
    %630 = vset.pattern.permute.xlu0 18
    %631 = vperm.xlu0 %630, %v56
    %v632 = vpop.permute.xlu0 %631
    %634 = vset.pattern.permute.xlu0 18
    %635 = vperm.xlu0 %634, %v57
    %v636 = vpop.permute.xlu0 %635
    %638 = vset.pattern.permute.xlu0 18
    %639 = vperm.xlu0 %638, %v58
    %v640 = vpop.permute.xlu0 %639
    %642 = vset.pattern.permute.xlu0 18
    %643 = vperm.xlu0 %642, %v59
    %v644 = vpop.permute.xlu0 %643
    %v646 = vmul.f32 %v621, %v632
    %v647 = vmul.f32 %v622, %v632
    %v648 = vmul.f32 %v623, %v632
    %v649 = vmul.f32 %v621, %v636
    %v650 = vmul.f32 %v624, %v636
    %v651 = vmul.f32 %v625, %v636
    %v652 = vmul.f32 %v621, %v640
    %v653 = vmul.f32 %v626, %v640
    %v654 = vmul.f32 %v627, %v640
    %v655 = vmul.f32 %v621, %v644
    %v656 = vmul.f32 %v628, %v644
    %v657 = vmul.f32 %v629, %v644
    %670 = vrot.lane.b32.xlu0 %v646, 15
    %v671 = vpop.permute.xlu0 %670
    %672 = vrot.lane.b32.xlu0 %v647, 15
    %v673 = vpop.permute.xlu0 %672
    %674 = vrot.lane.b32.xlu0 %v648, 15
    %v675 = vpop.permute.xlu0 %674
    %676 = vrot.lane.b32.xlu0 %v649, 15
    %v677 = vpop.permute.xlu0 %676
    %678 = vrot.lane.b32.xlu0 %v650, 15
    %v679 = vpop.permute.xlu0 %678
    %680 = vrot.lane.b32.xlu0 %v651, 15
    %v681 = vpop.permute.xlu0 %680
    %682 = vrot.lane.b32.xlu0 %v652, 15
    %v683 = vpop.permute.xlu0 %682
    %684 = vrot.lane.b32.xlu0 %v653, 15
    %v685 = vpop.permute.xlu0 %684
    %686 = vrot.lane.b32.xlu0 %v654, 15
    %v687 = vpop.permute.xlu0 %686
    %688 = vrot.lane.b32.xlu0 %v655, 15
    %v689 = vpop.permute.xlu0 %688
    %690 = vrot.lane.b32.xlu0 %v656, 15
    %v691 = vpop.permute.xlu0 %690
    %692 = vrot.lane.b32.xlu0 %v657, 15
    %v693 = vpop.permute.xlu0 %692
    %vm694 = vcmask 121856
    %v695 = vsel %vm694, %v671, %v673
    %v696 = vsel %vm694, %v673, %v675
    %v697 = vsel %vm694, %v677, %v679
    %v698 = vsel %vm694, %v679, %v681
    %v699 = vsel %vm694, %v683, %v685
    %v700 = vsel %vm694, %v685, %v687
    %v701 = vsel %vm694, %v689, %v691
    %v702 = vsel %vm694, %v691, %v693
    %v711 = vadd.f32 %v602, %v695
    %v712 = vadd.f32 %v603, %v696
    %v713 = vadd.f32 %v604, %v697
    %v714 = vadd.f32 %v605, %v698
    %v715 = vadd.f32 %v606, %v699
    %v716 = vadd.f32 %v607, %v700
    %v717 = vadd.f32 %v608, %v701
    %v718 = vadd.f32 %v609, %v702
    %719 = vrot.lane.b32.xlu0 %v380, 127
    %v720 = vpop.permute.xlu0 %719
    %721 = vrot.lane.b32.xlu0 %v381, 127
    %v722 = vpop.permute.xlu0 %721
    %vm723 = vcmask 1039360
    %v724 = vsel %vm723, %v720, %v722
    %v728 = vmul.f32 %v720, 0.0
    %v729 = vmul.f32 %v333, %v724
    %v730 = vmul.f32 %v334, %v722
    %v731 = vmul.f32 %v337, %v724
    %v732 = vmul.f32 %v338, %v722
    %v733 = vmul.f32 %v341, %v724
    %v734 = vmul.f32 %v342, %v722
    %v735 = vmul.f32 %v345, %v724
    %v736 = vmul.f32 %v346, %v722
    %737 = vset.pattern.permute.xlu0 19
    %738 = vperm.xlu0 %737, %v56
    %v739 = vpop.permute.xlu0 %738
    %741 = vset.pattern.permute.xlu0 19
    %742 = vperm.xlu0 %741, %v57
    %v743 = vpop.permute.xlu0 %742
    %745 = vset.pattern.permute.xlu0 19
    %746 = vperm.xlu0 %745, %v58
    %v747 = vpop.permute.xlu0 %746
    %749 = vset.pattern.permute.xlu0 19
    %750 = vperm.xlu0 %749, %v59
    %v751 = vpop.permute.xlu0 %750
    %v753 = vmul.f32 %v728, %v739
    %v754 = vmul.f32 %v729, %v739
    %v755 = vmul.f32 %v730, %v739
    %v756 = vmul.f32 %v728, %v743
    %v757 = vmul.f32 %v731, %v743
    %v758 = vmul.f32 %v732, %v743
    %v759 = vmul.f32 %v728, %v747
    %v760 = vmul.f32 %v733, %v747
    %v761 = vmul.f32 %v734, %v747
    %v762 = vmul.f32 %v728, %v751
    %v763 = vmul.f32 %v735, %v751
    %v764 = vmul.f32 %v736, %v751
    %777 = vrot.lane.b32.xlu0 %v753, 1
    %v778 = vpop.permute.xlu0 %777
    %779 = vrot.lane.b32.xlu0 %v754, 1
    %v780 = vpop.permute.xlu0 %779
    %781 = vrot.lane.b32.xlu0 %v755, 1
    %v782 = vpop.permute.xlu0 %781
    %783 = vrot.lane.b32.xlu0 %v756, 1
    %v784 = vpop.permute.xlu0 %783
    %785 = vrot.lane.b32.xlu0 %v757, 1
    %v786 = vpop.permute.xlu0 %785
    %787 = vrot.lane.b32.xlu0 %v758, 1
    %v788 = vpop.permute.xlu0 %787
    %789 = vrot.lane.b32.xlu0 %v759, 1
    %v790 = vpop.permute.xlu0 %789
    %791 = vrot.lane.b32.xlu0 %v760, 1
    %v792 = vpop.permute.xlu0 %791
    %793 = vrot.lane.b32.xlu0 %v761, 1
    %v794 = vpop.permute.xlu0 %793
    %795 = vrot.lane.b32.xlu0 %v762, 1
    %v796 = vpop.permute.xlu0 %795
    %797 = vrot.lane.b32.xlu0 %v763, 1
    %v798 = vpop.permute.xlu0 %797
    %799 = vrot.lane.b32.xlu0 %v764, 1
    %v800 = vpop.permute.xlu0 %799
    %vm801 = vcmask 7168
    %v802 = vsel %vm801, %v778, %v780
    %v803 = vsel %vm801, %v780, %v782
    %v804 = vsel %vm801, %v784, %v786
    %v805 = vsel %vm801, %v786, %v788
    %v806 = vsel %vm801, %v790, %v792
    %v807 = vsel %vm801, %v792, %v794
    %v808 = vsel %vm801, %v796, %v798
    %v809 = vsel %vm801, %v798, %v800
    %v818 = vadd.f32 %v711, %v802
    %v819 = vadd.f32 %v712, %v803
    %v820 = vadd.f32 %v713, %v804
    %v821 = vadd.f32 %v714, %v805
    %v822 = vadd.f32 %v715, %v806
    %v823 = vadd.f32 %v716, %v807
    %v824 = vadd.f32 %v717, %v808
    %v825 = vadd.f32 %v718, %v809
    %826 = vrot.lane.b32.xlu0 %v386, 1
    %v827 = vpop.permute.xlu0 %826
    %828 = vrot.lane.b32.xlu0 %v387, 1
    %v829 = vpop.permute.xlu0 %828
    %v830 = vsel %vm801, %v827, %v829
    %v834 = vmul.f32 %v333, %v827
    %v835 = vmul.f32 %v334, %v830
    %v836 = vmul.f32 %v829, 0.0
    %v837 = vmul.f32 %v337, %v827
    %v838 = vmul.f32 %v338, %v830
    %v839 = vmul.f32 %v341, %v827
    %v840 = vmul.f32 %v342, %v830
    %v841 = vmul.f32 %v345, %v827
    %v842 = vmul.f32 %v346, %v830
    %843 = vset.pattern.permute.xlu0 21
    %844 = vperm.xlu0 %843, %v56
    %v845 = vpop.permute.xlu0 %844
    %847 = vset.pattern.permute.xlu0 21
    %848 = vperm.xlu0 %847, %v57
    %v849 = vpop.permute.xlu0 %848
    %851 = vset.pattern.permute.xlu0 21
    %852 = vperm.xlu0 %851, %v58
    %v853 = vpop.permute.xlu0 %852
    %855 = vset.pattern.permute.xlu0 21
    %856 = vperm.xlu0 %855, %v59
    %v857 = vpop.permute.xlu0 %856
    %v859 = vmul.f32 %v834, %v845
    %v860 = vmul.f32 %v835, %v845
    %v861 = vmul.f32 %v836, %v845
    %v862 = vmul.f32 %v837, %v849
    %v863 = vmul.f32 %v838, %v849
    %v864 = vmul.f32 %v836, %v849
    %v865 = vmul.f32 %v839, %v853
    %v866 = vmul.f32 %v840, %v853
    %v867 = vmul.f32 %v836, %v853
    %v868 = vmul.f32 %v841, %v857
    %v869 = vmul.f32 %v842, %v857
    %v870 = vmul.f32 %v836, %v857
    %883 = vrot.lane.b32.xlu0 %v859, 127
    %v884 = vpop.permute.xlu0 %883
    %885 = vrot.lane.b32.xlu0 %v860, 127
    %v886 = vpop.permute.xlu0 %885
    %887 = vrot.lane.b32.xlu0 %v861, 127
    %v888 = vpop.permute.xlu0 %887
    %889 = vrot.lane.b32.xlu0 %v862, 127
    %v890 = vpop.permute.xlu0 %889
    %891 = vrot.lane.b32.xlu0 %v863, 127
    %v892 = vpop.permute.xlu0 %891
    %893 = vrot.lane.b32.xlu0 %v864, 127
    %v894 = vpop.permute.xlu0 %893
    %895 = vrot.lane.b32.xlu0 %v865, 127
    %v896 = vpop.permute.xlu0 %895
    %897 = vrot.lane.b32.xlu0 %v866, 127
    %v898 = vpop.permute.xlu0 %897
    %899 = vrot.lane.b32.xlu0 %v867, 127
    %v900 = vpop.permute.xlu0 %899
    %901 = vrot.lane.b32.xlu0 %v868, 127
    %v902 = vpop.permute.xlu0 %901
    %903 = vrot.lane.b32.xlu0 %v869, 127
    %v904 = vpop.permute.xlu0 %903
    %905 = vrot.lane.b32.xlu0 %v870, 127
    %v906 = vpop.permute.xlu0 %905
    %v907 = vsel %vm723, %v884, %v886
    %v908 = vsel %vm723, %v886, %v888
    %v909 = vsel %vm723, %v890, %v892
    %v910 = vsel %vm723, %v892, %v894
    %v911 = vsel %vm723, %v896, %v898
    %v912 = vsel %vm723, %v898, %v900
    %v913 = vsel %vm723, %v902, %v904
    %v914 = vsel %vm723, %v904, %v906
    %v923 = vadd.f32 %v818, %v907
    %v924 = vadd.f32 %v819, %v908
    %v925 = vadd.f32 %v820, %v909
    %v926 = vadd.f32 %v821, %v910
    %v927 = vadd.f32 %v822, %v911
    %v928 = vadd.f32 %v823, %v912
    %v929 = vadd.f32 %v824, %v913
    %v930 = vadd.f32 %v825, %v914
    %931 = vrot.lane.b32.xlu0 %v380, 15
    %v932 = vpop.permute.xlu0 %931
    %933 = vrot.lane.b32.xlu0 %v381, 15
    %v934 = vpop.permute.xlu0 %933
    %v935 = vsel %vm694, %v932, %v934
    %v939 = vmul.f32 %v333, %v932
    %v940 = vmul.f32 %v334, %v935
    %v941 = vmul.f32 %v934, 0.0
    %v942 = vmul.f32 %v337, %v932
    %v943 = vmul.f32 %v338, %v935
    %v944 = vmul.f32 %v341, %v932
    %v945 = vmul.f32 %v342, %v935
    %v946 = vmul.f32 %v345, %v932
    %v947 = vmul.f32 %v346, %v935
    %948 = vset.pattern.permute.xlu0 22
    %949 = vperm.xlu0 %948, %v56
    %v950 = vpop.permute.xlu0 %949
    %952 = vset.pattern.permute.xlu0 22
    %953 = vperm.xlu0 %952, %v57
    %v954 = vpop.permute.xlu0 %953
    %956 = vset.pattern.permute.xlu0 22
    %957 = vperm.xlu0 %956, %v58
    %v958 = vpop.permute.xlu0 %957
    %960 = vset.pattern.permute.xlu0 22
    %961 = vperm.xlu0 %960, %v59
    %v962 = vpop.permute.xlu0 %961
    %v964 = vmul.f32 %v939, %v950
    %v965 = vmul.f32 %v940, %v950
    %v966 = vmul.f32 %v941, %v950
    %v967 = vmul.f32 %v942, %v954
    %v968 = vmul.f32 %v943, %v954
    %v969 = vmul.f32 %v941, %v954
    %v970 = vmul.f32 %v944, %v958
    %v971 = vmul.f32 %v945, %v958
    %v972 = vmul.f32 %v941, %v958
    %v973 = vmul.f32 %v946, %v962
    %v974 = vmul.f32 %v947, %v962
    %v975 = vmul.f32 %v941, %v962
    %988 = vrot.lane.b32.xlu0 %v964, 113
    %v989 = vpop.permute.xlu0 %988
    %990 = vrot.lane.b32.xlu0 %v965, 113
    %v991 = vpop.permute.xlu0 %990
    %992 = vrot.lane.b32.xlu0 %v966, 113
    %v993 = vpop.permute.xlu0 %992
    %994 = vrot.lane.b32.xlu0 %v967, 113
    %v995 = vpop.permute.xlu0 %994
    %996 = vrot.lane.b32.xlu0 %v968, 113
    %v997 = vpop.permute.xlu0 %996
    %998 = vrot.lane.b32.xlu0 %v969, 113
    %v999 = vpop.permute.xlu0 %998
    %1000 = vrot.lane.b32.xlu0 %v970, 113
    %v1001 = vpop.permute.xlu0 %1000
    %1002 = vrot.lane.b32.xlu0 %v971, 113
    %v1003 = vpop.permute.xlu0 %1002
    %1004 = vrot.lane.b32.xlu0 %v972, 113
    %v1005 = vpop.permute.xlu0 %1004
    %1006 = vrot.lane.b32.xlu0 %v973, 113
    %v1007 = vpop.permute.xlu0 %1006
    %1008 = vrot.lane.b32.xlu0 %v974, 113
    %v1009 = vpop.permute.xlu0 %1008
    %1010 = vrot.lane.b32.xlu0 %v975, 113
    %v1011 = vpop.permute.xlu0 %1010
    %v1012 = vsel %vm616, %v989, %v991
    %v1013 = vsel %vm616, %v991, %v993
    %v1014 = vsel %vm616, %v995, %v997
    %v1015 = vsel %vm616, %v997, %v999
    %v1016 = vsel %vm616, %v1001, %v1003
    %v1017 = vsel %vm616, %v1003, %v1005
    %v1018 = vsel %vm616, %v1007, %v1009
    %v1019 = vsel %vm616, %v1009, %v1011
    %v1028 = vadd.f32 %v923, %v1012
    %v1029 = vadd.f32 %v924, %v1013
    %v1030 = vadd.f32 %v925, %v1014
    %v1031 = vadd.f32 %v926, %v1015
    %v1032 = vadd.f32 %v927, %v1016
    %v1033 = vadd.f32 %v928, %v1017
    %v1034 = vadd.f32 %v929, %v1018
    %v1035 = vadd.f32 %v930, %v1019
    %1036 = vset.pattern.permute.xlu0 23
    %1037 = vperm.xlu0 %1036, %v56
    %v1038 = vpop.permute.xlu0 %1037
    %1040 = vset.pattern.permute.xlu0 23
    %1041 = vperm.xlu0 %1040, %v57
    %v1042 = vpop.permute.xlu0 %1041
    %1044 = vset.pattern.permute.xlu0 23
    %1045 = vperm.xlu0 %1044, %v58
    %v1046 = vpop.permute.xlu0 %1045
    %1048 = vset.pattern.permute.xlu0 23
    %1049 = vperm.xlu0 %1048, %v59
    %v1050 = vpop.permute.xlu0 %1049
    %v1052 = vmul.f32 %v333, %v1038
    %v1053 = vmul.f32 %v334, %v1038
    %v1054 = vmul.f32 %v1038, 0.0
    %v1055 = vmul.f32 %v337, %v1042
    %v1056 = vmul.f32 %v338, %v1042
    %v1057 = vmul.f32 %v1042, 0.0
    %v1058 = vmul.f32 %v341, %v1046
    %v1059 = vmul.f32 %v342, %v1046
    %v1060 = vmul.f32 %v1046, 0.0
    %v1061 = vmul.f32 %v345, %v1050
    %v1062 = vmul.f32 %v346, %v1050
    %v1063 = vmul.f32 %v1050, 0.0
    %1076 = vrot.lane.b32.xlu0 %v1052, 112
    %v1077 = vpop.permute.xlu0 %1076
    %1078 = vrot.lane.b32.xlu0 %v1053, 112
    %v1079 = vpop.permute.xlu0 %1078
    %1080 = vrot.lane.b32.xlu0 %v1054, 112
    %v1081 = vpop.permute.xlu0 %1080
    %1082 = vrot.lane.b32.xlu0 %v1055, 112
    %v1083 = vpop.permute.xlu0 %1082
    %1084 = vrot.lane.b32.xlu0 %v1056, 112
    %v1085 = vpop.permute.xlu0 %1084
    %1086 = vrot.lane.b32.xlu0 %v1057, 112
    %v1087 = vpop.permute.xlu0 %1086
    %1088 = vrot.lane.b32.xlu0 %v1058, 112
    %v1089 = vpop.permute.xlu0 %1088
    %1090 = vrot.lane.b32.xlu0 %v1059, 112
    %v1091 = vpop.permute.xlu0 %1090
    %1092 = vrot.lane.b32.xlu0 %v1060, 112
    %v1093 = vpop.permute.xlu0 %1092
    %1094 = vrot.lane.b32.xlu0 %v1061, 112
    %v1095 = vpop.permute.xlu0 %1094
    %1096 = vrot.lane.b32.xlu0 %v1062, 112
    %v1097 = vpop.permute.xlu0 %1096
    %1098 = vrot.lane.b32.xlu0 %v1063, 112
    %v1099 = vpop.permute.xlu0 %1098
    %vm1100 = vcmask 916480
    %v1101 = vsel %vm1100, %v1077, %v1079
    %v1102 = vsel %vm1100, %v1079, %v1081
    %v1103 = vsel %vm1100, %v1083, %v1085
    %v1104 = vsel %vm1100, %v1085, %v1087
    %v1105 = vsel %vm1100, %v1089, %v1091
    %v1106 = vsel %vm1100, %v1091, %v1093
    %v1107 = vsel %vm1100, %v1095, %v1097
    %v1108 = vsel %vm1100, %v1097, %v1099
    %v1117 = vadd.f32 %v1028, %v1101
    %v1118 = vadd.f32 %v1029, %v1102
    %v1119 = vadd.f32 %v1030, %v1103
    %v1120 = vadd.f32 %v1031, %v1104
    %v1121 = vadd.f32 %v1032, %v1105
    %v1122 = vadd.f32 %v1033, %v1106
    %v1123 = vadd.f32 %v1034, %v1107
    %v1124 = vadd.f32 %v1035, %v1108
    %1125 = vrot.lane.b32.xlu0 %v386, 17
    %v1126 = vpop.permute.xlu0 %1125
    %1127 = vrot.lane.b32.xlu0 %v387, 17
    %v1128 = vpop.permute.xlu0 %1127
    %v1129 = vsel %vm496, %v1126, %v1128
    %v1133 = vmul.f32 %v333, %v1126
    %v1134 = vmul.f32 %v334, %v1129
    %v1135 = vmul.f32 %v1128, 0.0
    %v1136 = vmul.f32 %v337, %v1126
    %v1137 = vmul.f32 %v338, %v1129
    %v1138 = vmul.f32 %v341, %v1126
    %v1139 = vmul.f32 %v342, %v1129
    %v1140 = vmul.f32 %v345, %v1126
    %v1141 = vmul.f32 %v346, %v1129
    %1142 = vset.pattern.permute.xlu0 24
    %1143 = vperm.xlu0 %1142, %v56
    %v1144 = vpop.permute.xlu0 %1143
    %1146 = vset.pattern.permute.xlu0 24
    %1147 = vperm.xlu0 %1146, %v57
    %v1148 = vpop.permute.xlu0 %1147
    %1150 = vset.pattern.permute.xlu0 24
    %1151 = vperm.xlu0 %1150, %v58
    %v1152 = vpop.permute.xlu0 %1151
    %1154 = vset.pattern.permute.xlu0 24
    %1155 = vperm.xlu0 %1154, %v59
    %v1156 = vpop.permute.xlu0 %1155
    %v1158 = vmul.f32 %v1133, %v1144
    %v1159 = vmul.f32 %v1134, %v1144
    %v1160 = vmul.f32 %v1135, %v1144
    %v1161 = vmul.f32 %v1136, %v1148
    %v1162 = vmul.f32 %v1137, %v1148
    %v1163 = vmul.f32 %v1135, %v1148
    %v1164 = vmul.f32 %v1138, %v1152
    %v1165 = vmul.f32 %v1139, %v1152
    %v1166 = vmul.f32 %v1135, %v1152
    %v1167 = vmul.f32 %v1140, %v1156
    %v1168 = vmul.f32 %v1141, %v1156
    %v1169 = vmul.f32 %v1135, %v1156
    %1182 = vrot.lane.b32.xlu0 %v1158, 111
    %v1183 = vpop.permute.xlu0 %1182
    %1184 = vrot.lane.b32.xlu0 %v1159, 111
    %v1185 = vpop.permute.xlu0 %1184
    %1186 = vrot.lane.b32.xlu0 %v1160, 111
    %v1187 = vpop.permute.xlu0 %1186
    %1188 = vrot.lane.b32.xlu0 %v1161, 111
    %v1189 = vpop.permute.xlu0 %1188
    %1190 = vrot.lane.b32.xlu0 %v1162, 111
    %v1191 = vpop.permute.xlu0 %1190
    %1192 = vrot.lane.b32.xlu0 %v1163, 111
    %v1193 = vpop.permute.xlu0 %1192
    %1194 = vrot.lane.b32.xlu0 %v1164, 111
    %v1195 = vpop.permute.xlu0 %1194
    %1196 = vrot.lane.b32.xlu0 %v1165, 111
    %v1197 = vpop.permute.xlu0 %1196
    %1198 = vrot.lane.b32.xlu0 %v1166, 111
    %v1199 = vpop.permute.xlu0 %1198
    %1200 = vrot.lane.b32.xlu0 %v1167, 111
    %v1201 = vpop.permute.xlu0 %1200
    %1202 = vrot.lane.b32.xlu0 %v1168, 111
    %v1203 = vpop.permute.xlu0 %1202
    %1204 = vrot.lane.b32.xlu0 %v1169, 111
    %v1205 = vpop.permute.xlu0 %1204
    %v1206 = vsel %vm418, %v1183, %v1185
    %v1207 = vsel %vm418, %v1185, %v1187
    %v1208 = vsel %vm418, %v1189, %v1191
    %v1209 = vsel %vm418, %v1191, %v1193
    %v1210 = vsel %vm418, %v1195, %v1197
    %v1211 = vsel %vm418, %v1197, %v1199
    %v1212 = vsel %vm418, %v1201, %v1203
    %v1213 = vsel %vm418, %v1203, %v1205
    %v1222 = vadd.f32 %v1117, %v1206
    %v1223 = vadd.f32 %v1118, %v1207
    %v1224 = vadd.f32 %v1119, %v1208
    %v1225 = vadd.f32 %v1120, %v1209
    %v1226 = vadd.f32 %v1121, %v1210
    %v1227 = vadd.f32 %v1122, %v1211
    %v1228 = vadd.f32 %v1123, %v1212
    %v1229 = vadd.f32 %v1124, %v1213
    %1230 = vset.pattern.permute.xlu0 26
    %1231 = vperm.xlu0 %1230, %v56
    %v1232 = vpop.permute.xlu0 %1231
    %1234 = vset.pattern.permute.xlu0 26
    %1235 = vperm.xlu0 %1234, %v57
    %v1236 = vpop.permute.xlu0 %1235
    %1238 = vset.pattern.permute.xlu0 26
    %1239 = vperm.xlu0 %1238, %v58
    %v1240 = vpop.permute.xlu0 %1239
    %1242 = vset.pattern.permute.xlu0 26
    %1243 = vperm.xlu0 %1242, %v59
    %v1244 = vpop.permute.xlu0 %1243
    %v1246 = vadd.f32 %v1222, %v1232
    %v1247 = vadd.f32 %v1223, %v1232
    %v1248 = vadd.f32 %v1224, %v1236
    %v1249 = vadd.f32 %v1225, %v1236
    %v1250 = vadd.f32 %v1226, %v1240
    %v1251 = vadd.f32 %v1227, %v1240
    %v1252 = vadd.f32 %v1228, %v1244
    %v1253 = vadd.f32 %v1229, %v1244
    %v1254 = vadd.f32 %v1246, 3.0
    %v1255 = vadd.f32 %v1247, 3.0
    %v1256 = vadd.f32 %v1248, 3.0
    %v1257 = vadd.f32 %v1249, 3.0
    %v1258 = vadd.f32 %v1250, 3.0
    %v1259 = vadd.f32 %v1251, 3.0
    %v1260 = vadd.f32 %v1252, 3.0
    %v1261 = vadd.f32 %v1253, 3.0
    %v1262 = vmax.f32 %v1254, 0.0
    %v1263 = vmax.f32 %v1255, 0.0
    %v1264 = vmax.f32 %v1256, 0.0
    %v1265 = vmax.f32 %v1257, 0.0
    %v1266 = vmax.f32 %v1258, 0.0
    %v1267 = vmax.f32 %v1259, 0.0
    %v1268 = vmax.f32 %v1260, 0.0
    %v1269 = vmax.f32 %v1261, 0.0
    %v1270 = vmin.f32 %v1262, 6.0
    %v1271 = vmin.f32 %v1263, 6.0
    %v1272 = vmin.f32 %v1264, 6.0
    %v1273 = vmin.f32 %v1265, 6.0
    %v1274 = vmin.f32 %v1266, 6.0
    %v1275 = vmin.f32 %v1267, 6.0
    %v1276 = vmin.f32 %v1268, 6.0
    %v1277 = vmin.f32 %v1269, 6.0
    %v1278 = vmul.f32 %v1246, %v1270
    %v1279 = vmul.f32 %v1247, %v1271
    %v1280 = vmul.f32 %v1248, %v1272
    %v1281 = vmul.f32 %v1249, %v1273
    %v1282 = vmul.f32 %v1250, %v1274
    %v1283 = vmul.f32 %v1251, %v1275
    %v1284 = vmul.f32 %v1252, %v1276
    %v1285 = vmul.f32 %v1253, %v1277
    %v1286 = vmul.f32 %v1278, %v332
    %v1287 = vmul.f32 %v1279, %v332
    %v1288 = vmul.f32 %v1280, %v332
    %v1289 = vmul.f32 %v1281, %v332
    %v1290 = vmul.f32 %v1282, %v332
    %v1291 = vmul.f32 %v1283, %v332
    %v1292 = vmul.f32 %v1284, %v332
    %v1293 = vmul.f32 %v1285, %v332
    %vm1294 = vcmask 261120
    %v1296 = vsel %vm1294, %v60, 0
    %1298 = vmatprep.subr.mxu0 %v1287
    %1299 = vmatpush1.msra.mxu0 %v1286
    %1300 = vmatprep.subr.mxu0 %v1289
    %1301 = vmatpush1.msra.mxu0 %v1288
    %1302 = vmatprep.subr.mxu0 %v1291
    %1303 = vmatpush1.msra.mxu0 %v1290
    %1304 = vmatprep.subr.mxu0 %v1293
    %1305 = vmatpush1.msra.mxu0 %v1292
    %1306 = vmatprep.subr.mxu0 0.0
    %1307 = vmatpush1.msra.mxu0 0.0
    %1308 = vmatprep.subr.mxu0 0.0
    %1309 = vmatpush1.msra.mxu0 0.0
    %1310 = vmatprep.subr.mxu0 0.0
    %1311 = vmatpush1.msra.mxu0 0.0
    %1312 = vmatprep.subr.mxu0 0.0
    %1313 = vmatpush1.msra.mxu0 0.0
    %1314 = vmatprep.subr.mxu0 0.0
    %1315 = vmatpush1.msra.mxu0 0.0
    %1316 = vmatprep.subr.mxu0 0.0
    %1317 = vmatpush1.msra.mxu0 0.0
    %1318 = vmatprep.subr.mxu0 0.0
    %1319 = vmatpush1.msra.mxu0 0.0
    %1320 = vmatprep.subr.mxu0 0.0
    %1321 = vmatpush1.msra.mxu0 0.0
    %1322 = vmatprep.subr.mxu0 0.0
    %1323 = vmatpush1.msra.mxu0 0.0
    %1324 = vmatprep.subr.mxu0 0.0
    %1325 = vmatpush1.msra.mxu0 0.0
    %1326 = vmatprep.subr.mxu0 0.0
    %1327 = vmatpush1.msra.mxu0 0.0
    %1328 = vmatprep.subr.mxu0 0.0
    %1329 = vmatpush1.msra.mxu0 0.0
    %1330 = vmatprep.subr.mxu0 0.0
    %1331 = vmatpush1.msra.mxu0 0.0
    %1332 = vmatprep.subr.mxu0 0.0
    %1333 = vmatpush1.msra.mxu0 0.0
    %1334 = vmatprep.subr.mxu0 0.0
    %1335 = vmatpush1.msra.mxu0 0.0
    %1336 = vmatprep.subr.mxu0 0.0
    %1337 = vmatpush1.msra.mxu0 0.0
    %1338 = vmatprep.subr.mxu0 0.0
    %1339 = vmatpush1.msra.mxu0 0.0
    %1340 = vmatprep.subr.mxu0 0.0
    %1341 = vmatpush1.msra.mxu0 0.0
    %1342 = vmatprep.subr.mxu0 0.0
    %1343 = vmatpush1.msra.mxu0 0.0
    %1344 = vmatprep.subr.mxu0 0.0
    %1345 = vmatpush1.msra.mxu0 0.0
    %1346 = vmatprep.subr.mxu0 0.0
    %1347 = vmatpush1.msra.mxu0 0.0
    %1348 = vmatprep.subr.mxu0 0.0
    %1349 = vmatpush1.msra.mxu0 0.0
    %1350 = vmatprep.subr.mxu0 0.0
    %1351 = vmatpush1.msra.mxu0 0.0
    %1352 = vmatprep.subr.mxu0 0.0
    %1353 = vmatpush1.msra.mxu0 0.0
    %1354 = vmatprep.subr.mxu0 0.0
    %1355 = vmatpush1.msra.mxu0 0.0
    %1356 = vmatprep.subr.mxu0 0.0
    %1357 = vmatpush1.msra.mxu0 0.0
    %1358 = vmatprep.subr.mxu0 0.0
    %1359 = vmatpush1.msra.mxu0 0.0
    %1360 = vmatprep.subr.mxu0 0.0
    %1361 = vmatpush1.msra.mxu0 0.0
    %1362 = vmatprep.mubr.f32.mxu0 0.0
    %1363 = vmatmul.mubr.f32.gmra.mrb[0].mxu0 %v1296
    %v1364 = vpop.f32.mrb[0].mxu0
    %v1365 = vadd.f32 0.0, %v1364
    %v1366 = vpop.f32.mrb[0].mxu0
    %v1367 = vadd.f32 0.0, %v1366
    %1368 = vdwg.mxu0
    %v1369 = vadd.f32 %v1365, %v1367
    %1370 = vadd.xlane.f32.xlu0 %v1369
    %v1371 = vpop.xlane.xlu0 %1370
    %v1372 = vrcp.pop 256.0
    %v1373 = vmul.f32 %v1371, %v1372
    %v1374 = vadd.f32 %v1373, %v60
    %v1375 = vmax.f32 %v1374, 0.0
    %1377 = vset.pattern.permute.xlu0 64
    %1378 = vperm.xlu0 %1377, %v1375
    %v1379 = vpop.permute.xlu0 %1378
    %1381 = vrot.lane.b32.xlu0 %v56, 120
    %v1382 = vpop.permute.xlu0 %1381
    %1383 = vrot.lane.b32.xlu0 %v57, 120
    %v1384 = vpop.permute.xlu0 %1383
    %1385 = vrot.lane.b32.xlu0 %v58, 120
    %v1386 = vpop.permute.xlu0 %1385
    %1387 = vrot.lane.b32.xlu0 %v59, 120
    %v1388 = vpop.permute.xlu0 %1387
    %v1389 = vsel %vm81, %v1382, 0
    %v1391 = vsel %vm81, %v1384, 0
    %v1393 = vsel %vm81, %v1386, 0
    %v1395 = vsel %vm81, %v1388, 0
    %1397 = vmatprep.subr.mxu0 0.0
    %1398 = vmatpush1.msra.mxu0 %v1379
    %1399 = vmatprep.subr.mxu0 0.0
    %1400 = vmatpush1.msra.mxu0 0.0
    %1401 = vmatprep.subr.mxu0 0.0
    %1402 = vmatpush1.msra.mxu0 0.0
    %1403 = vmatprep.subr.mxu0 0.0
    %1404 = vmatpush1.msra.mxu0 0.0
    %1405 = vmatprep.subr.mxu0 0.0
    %1406 = vmatpush1.msra.mxu0 0.0
    %1407 = vmatprep.subr.mxu0 0.0
    %1408 = vmatpush1.msra.mxu0 0.0
    %1409 = vmatprep.subr.mxu0 0.0
    %1410 = vmatpush1.msra.mxu0 0.0
    %1411 = vmatprep.subr.mxu0 0.0
    %1412 = vmatpush1.msra.mxu0 0.0
    %1413 = vmatprep.subr.mxu0 0.0
    %1414 = vmatpush1.msra.mxu0 0.0
    %1415 = vmatprep.subr.mxu0 0.0
    %1416 = vmatpush1.msra.mxu0 0.0
    %1417 = vmatprep.subr.mxu0 0.0
    %1418 = vmatpush1.msra.mxu0 0.0
    %1419 = vmatprep.subr.mxu0 0.0
    %1420 = vmatpush1.msra.mxu0 0.0
    %1421 = vmatprep.subr.mxu0 0.0
    %1422 = vmatpush1.msra.mxu0 0.0
    %1423 = vmatprep.subr.mxu0 0.0
    %1424 = vmatpush1.msra.mxu0 0.0
    %1425 = vmatprep.subr.mxu0 0.0
    %1426 = vmatpush1.msra.mxu0 0.0
    %1427 = vmatprep.subr.mxu0 0.0
    %1428 = vmatpush1.msra.mxu0 0.0
    %1429 = vmatprep.subr.mxu0 0.0
    %1430 = vmatpush1.msra.mxu0 0.0
    %1431 = vmatprep.subr.mxu0 0.0
    %1432 = vmatpush1.msra.mxu0 0.0
    %1433 = vmatprep.subr.mxu0 0.0
    %1434 = vmatpush1.msra.mxu0 0.0
    %1435 = vmatprep.subr.mxu0 0.0
    %1436 = vmatpush1.msra.mxu0 0.0
    %1437 = vmatprep.subr.mxu0 0.0
    %1438 = vmatpush1.msra.mxu0 0.0
    %1439 = vmatprep.subr.mxu0 0.0
    %1440 = vmatpush1.msra.mxu0 0.0
    %1441 = vmatprep.subr.mxu0 0.0
    %1442 = vmatpush1.msra.mxu0 0.0
    %1443 = vmatprep.subr.mxu0 0.0
    %1444 = vmatpush1.msra.mxu0 0.0
    %1445 = vmatprep.subr.mxu0 0.0
    %1446 = vmatpush1.msra.mxu0 0.0
    %1447 = vmatprep.subr.mxu0 0.0
    %1448 = vmatpush1.msra.mxu0 0.0
    %1449 = vmatprep.subr.mxu0 0.0
    %1450 = vmatpush1.msra.mxu0 0.0
    %1451 = vmatprep.subr.mxu0 0.0
    %1452 = vmatpush1.msra.mxu0 0.0
    %1453 = vmatprep.subr.mxu0 0.0
    %1454 = vmatpush1.msra.mxu0 0.0
    %1455 = vmatprep.subr.mxu0 0.0
    %1456 = vmatpush1.msra.mxu0 0.0
    %1457 = vmatprep.subr.mxu0 0.0
    %1458 = vmatpush1.msra.mxu0 0.0
    %1459 = vmatprep.subr.mxu0 0.0
    %1460 = vmatpush1.msra.mxu0 0.0
    %1461 = vmatprep.mubr.f32.mxu0 0.0
    %1462 = vmatmul.mubr.f32.gmra.mrb[0].mxu0 %v1389
    %v1463 = vpop.f32.mrb[0].mxu0
    %v1464 = vadd.f32 0.0, %v1463
    %v1465 = vpop.f32.mrb[0].mxu0
    %1466 = vmatprep.mubr.f32.mxu0 0.0
    %1467 = vmatmul.mubr.f32.gmra.mrb[0].mxu0 %v1391
    %v1468 = vpop.f32.mrb[0].mxu0
    %v1469 = vadd.f32 0.0, %v1468
    %v1470 = vpop.f32.mrb[0].mxu0
    %1471 = vmatprep.mubr.f32.mxu0 0.0
    %1472 = vmatmul.mubr.f32.gmra.mrb[0].mxu0 %v1393
    %v1473 = vpop.f32.mrb[0].mxu0
    %v1474 = vadd.f32 0.0, %v1473
    %v1475 = vpop.f32.mrb[0].mxu0
    %1476 = vmatprep.mubr.f32.mxu0 0.0
    %1477 = vmatmul.mubr.f32.gmra.mrb[0].mxu0 %v1395
    %v1478 = vpop.f32.mrb[0].mxu0
    %v1479 = vadd.f32 0.0, %v1478
    %v1480 = vpop.f32.mrb[0].mxu0
    %1481 = vdwg.mxu0
    %1482 = vrot.lane.b32.xlu0 %v56, 101
    %v1483 = vpop.permute.xlu0 %1482
    %1484 = vrot.lane.b32.xlu0 %v57, 101
    %v1485 = vpop.permute.xlu0 %1484
    %1486 = vrot.lane.b32.xlu0 %v58, 101
    %v1487 = vpop.permute.xlu0 %1486
    %1488 = vrot.lane.b32.xlu0 %v59, 101
    %v1489 = vpop.permute.xlu0 %1488
    %v1494 = vadd.f32 %v1464, %v1483
    %v1495 = vadd.f32 %v1469, %v1485
    %v1496 = vadd.f32 %v1474, %v1487
    %v1497 = vadd.f32 %v1479, %v1489
    %v1498 = vadd.f32 %v1494, 3.0
    %v1499 = vadd.f32 %v1495, 3.0
    %v1500 = vadd.f32 %v1496, 3.0
    %v1501 = vadd.f32 %v1497, 3.0
    %v1502 = vmax.f32 %v1498, 0.0
    %v1503 = vmax.f32 %v1499, 0.0
    %v1504 = vmax.f32 %v1500, 0.0
    %v1505 = vmax.f32 %v1501, 0.0
    %v1506 = vmin.f32 %v1502, 6.0
    %v1507 = vmin.f32 %v1503, 6.0
    %v1508 = vmin.f32 %v1504, 6.0
    %v1509 = vmin.f32 %v1505, 6.0
    %v1510 = vmul.f32 %v1506, %v332
    %v1511 = vmul.f32 %v1507, %v332
    %v1512 = vmul.f32 %v1508, %v332
    %v1513 = vmul.f32 %v1509, %v332
    %1515 = vset.pattern.permute.xlu0 0
    %1516 = vperm.xlu0 %1515, %v1510
    %v1517 = vpop.permute.xlu0 %1516
    %1520 = vset.pattern.permute.xlu0 0
    %1521 = vperm.xlu0 %1520, %v1511
    %v1522 = vpop.permute.xlu0 %1521
    %1525 = vset.pattern.permute.xlu0 0
    %1526 = vperm.xlu0 %1525, %v1512
    %v1527 = vpop.permute.xlu0 %1526
    %1530 = vset.pattern.permute.xlu0 0
    %1531 = vperm.xlu0 %1530, %v1513
    %v1532 = vpop.permute.xlu0 %1531
    %v1534 = vmul.f32 %v1286, %v1517
    %v1535 = vmul.f32 %v1287, %v1517
    %v1536 = vmul.f32 %v1288, %v1522
    %v1537 = vmul.f32 %v1289, %v1522
    %v1538 = vmul.f32 %v1290, %v1527
    %v1539 = vmul.f32 %v1291, %v1527
    %v1540 = vmul.f32 %v1292, %v1532
    %v1541 = vmul.f32 %v1293, %v1532
    %v1542 = vmul.f32 %v335, %v390
    %v1543 = vmul.f32 %v336, %v390
    %v1544 = vmul.f32 %v339, %v394
    %v1545 = vmul.f32 %v340, %v394
    %v1546 = vmul.f32 %v343, %v398
    %v1547 = vmul.f32 %v344, %v398
    %v1548 = vmul.f32 %v347, %v402
    %v1549 = vmul.f32 %v348, %v402
    %v1550 = vmul.f32 %v335, %v419
    %v1551 = vmul.f32 %v336, %v417
    %v1552 = vmul.f32 %v339, %v419
    %v1553 = vmul.f32 %v340, %v417
    %v1554 = vmul.f32 %v343, %v419
    %v1555 = vmul.f32 %v344, %v417
    %v1556 = vmul.f32 %v347, %v419
    %v1557 = vmul.f32 %v348, %v417
    %v1558 = vmul.f32 %v1550, %v434
    %v1559 = vmul.f32 %v1551, %v434
    %v1560 = vmul.f32 %v1552, %v438
    %v1561 = vmul.f32 %v1553, %v438
    %v1562 = vmul.f32 %v1554, %v442
    %v1563 = vmul.f32 %v1555, %v442
    %v1564 = vmul.f32 %v1556, %v446
    %v1565 = vmul.f32 %v1557, %v446
    %1574 = vrot.lane.b32.xlu0 %v1558, 17
    %v1575 = vpop.permute.xlu0 %1574
    %1576 = vrot.lane.b32.xlu0 %v1559, 17
    %v1577 = vpop.permute.xlu0 %1576
    %1578 = vrot.lane.b32.xlu0 %v1560, 17
    %v1579 = vpop.permute.xlu0 %1578
    %1580 = vrot.lane.b32.xlu0 %v1561, 17
    %v1581 = vpop.permute.xlu0 %1580
    %1582 = vrot.lane.b32.xlu0 %v1562, 17
    %v1583 = vpop.permute.xlu0 %1582
    %1584 = vrot.lane.b32.xlu0 %v1563, 17
    %v1585 = vpop.permute.xlu0 %1584
    %1586 = vrot.lane.b32.xlu0 %v1564, 17
    %v1587 = vpop.permute.xlu0 %1586
    %1588 = vrot.lane.b32.xlu0 %v1565, 17
    %v1589 = vpop.permute.xlu0 %1588
    %v1590 = vsel %vm496, %v473, %v1575
    %v1591 = vsel %vm496, %v1575, %v1577
    %v1592 = vsel %vm496, %v479, %v1579
    %v1593 = vsel %vm496, %v1579, %v1581
    %v1594 = vsel %vm496, %v485, %v1583
    %v1595 = vsel %vm496, %v1583, %v1585
    %v1596 = vsel %vm496, %v491, %v1587
    %v1597 = vsel %vm496, %v1587, %v1589
    %v1606 = vadd.f32 %v1542, %v1590
    %v1607 = vadd.f32 %v1543, %v1591
    %v1608 = vadd.f32 %v1544, %v1592
    %v1609 = vadd.f32 %v1545, %v1593
    %v1610 = vadd.f32 %v1546, %v1594
    %v1611 = vadd.f32 %v1547, %v1595
    %v1612 = vadd.f32 %v1548, %v1596
    %v1613 = vadd.f32 %v1549, %v1597
    %v1614 = vmul.f32 %v335, %v523
    %v1615 = vmul.f32 %v336, %v523
    %v1616 = vmul.f32 %v339, %v527
    %v1617 = vmul.f32 %v340, %v527
    %v1618 = vmul.f32 %v343, %v531
    %v1619 = vmul.f32 %v344, %v531
    %v1620 = vmul.f32 %v347, %v535
    %v1621 = vmul.f32 %v348, %v535
    %1630 = vrot.lane.b32.xlu0 %v1614, 16
    %v1631 = vpop.permute.xlu0 %1630
    %1632 = vrot.lane.b32.xlu0 %v1615, 16
    %v1633 = vpop.permute.xlu0 %1632
    %1634 = vrot.lane.b32.xlu0 %v1616, 16
    %v1635 = vpop.permute.xlu0 %1634
    %1636 = vrot.lane.b32.xlu0 %v1617, 16
    %v1637 = vpop.permute.xlu0 %1636
    %1638 = vrot.lane.b32.xlu0 %v1618, 16
    %v1639 = vpop.permute.xlu0 %1638
    %1640 = vrot.lane.b32.xlu0 %v1619, 16
    %v1641 = vpop.permute.xlu0 %1640
    %1642 = vrot.lane.b32.xlu0 %v1620, 16
    %v1643 = vpop.permute.xlu0 %1642
    %1644 = vrot.lane.b32.xlu0 %v1621, 16
    %v1645 = vpop.permute.xlu0 %1644
    %v1646 = vsel %vm585, %v562, %v1631
    %v1647 = vsel %vm585, %v1631, %v1633
    %v1648 = vsel %vm585, %v568, %v1635
    %v1649 = vsel %vm585, %v1635, %v1637
    %v1650 = vsel %vm585, %v574, %v1639
    %v1651 = vsel %vm585, %v1639, %v1641
    %v1652 = vsel %vm585, %v580, %v1643
    %v1653 = vsel %vm585, %v1643, %v1645
    %v1662 = vadd.f32 %v1606, %v1646
    %v1663 = vadd.f32 %v1607, %v1647
    %v1664 = vadd.f32 %v1608, %v1648
    %v1665 = vadd.f32 %v1609, %v1649
    %v1666 = vadd.f32 %v1610, %v1650
    %v1667 = vadd.f32 %v1611, %v1651
    %v1668 = vadd.f32 %v1612, %v1652
    %v1669 = vadd.f32 %v1613, %v1653
    %v1670 = vmul.f32 %v335, %v617
    %v1671 = vmul.f32 %v336, %v615
    %v1672 = vmul.f32 %v339, %v617
    %v1673 = vmul.f32 %v340, %v615
    %v1674 = vmul.f32 %v343, %v617
    %v1675 = vmul.f32 %v344, %v615
    %v1676 = vmul.f32 %v347, %v617
    %v1677 = vmul.f32 %v348, %v615
    %v1678 = vmul.f32 %v1670, %v632
    %v1679 = vmul.f32 %v1671, %v632
    %v1680 = vmul.f32 %v1672, %v636
    %v1681 = vmul.f32 %v1673, %v636
    %v1682 = vmul.f32 %v1674, %v640
    %v1683 = vmul.f32 %v1675, %v640
    %v1684 = vmul.f32 %v1676, %v644
    %v1685 = vmul.f32 %v1677, %v644
    %1694 = vrot.lane.b32.xlu0 %v1678, 15
    %v1695 = vpop.permute.xlu0 %1694
    %1696 = vrot.lane.b32.xlu0 %v1679, 15
    %v1697 = vpop.permute.xlu0 %1696
    %1698 = vrot.lane.b32.xlu0 %v1680, 15
    %v1699 = vpop.permute.xlu0 %1698
    %1700 = vrot.lane.b32.xlu0 %v1681, 15
    %v1701 = vpop.permute.xlu0 %1700
    %1702 = vrot.lane.b32.xlu0 %v1682, 15
    %v1703 = vpop.permute.xlu0 %1702
    %1704 = vrot.lane.b32.xlu0 %v1683, 15
    %v1705 = vpop.permute.xlu0 %1704
    %1706 = vrot.lane.b32.xlu0 %v1684, 15
    %v1707 = vpop.permute.xlu0 %1706
    %1708 = vrot.lane.b32.xlu0 %v1685, 15
    %v1709 = vpop.permute.xlu0 %1708
    %v1710 = vsel %vm694, %v671, %v1695
    %v1711 = vsel %vm694, %v1695, %v1697
    %v1712 = vsel %vm694, %v677, %v1699
    %v1713 = vsel %vm694, %v1699, %v1701
    %v1714 = vsel %vm694, %v683, %v1703
    %v1715 = vsel %vm694, %v1703, %v1705
    %v1716 = vsel %vm694, %v689, %v1707
    %v1717 = vsel %vm694, %v1707, %v1709
    %v1726 = vadd.f32 %v1662, %v1710
    %v1727 = vadd.f32 %v1663, %v1711
    %v1728 = vadd.f32 %v1664, %v1712
    %v1729 = vadd.f32 %v1665, %v1713
    %v1730 = vadd.f32 %v1666, %v1714
    %v1731 = vadd.f32 %v1667, %v1715
    %v1732 = vadd.f32 %v1668, %v1716
    %v1733 = vadd.f32 %v1669, %v1717
    %v1734 = vmul.f32 %v335, %v724
    %v1735 = vmul.f32 %v336, %v722
    %v1736 = vmul.f32 %v339, %v724
    %v1737 = vmul.f32 %v340, %v722
    %v1738 = vmul.f32 %v343, %v724
    %v1739 = vmul.f32 %v344, %v722
    %v1740 = vmul.f32 %v347, %v724
    %v1741 = vmul.f32 %v348, %v722
    %v1742 = vmul.f32 %v1734, %v739
    %v1743 = vmul.f32 %v1735, %v739
    %v1744 = vmul.f32 %v1736, %v743
    %v1745 = vmul.f32 %v1737, %v743
    %v1746 = vmul.f32 %v1738, %v747
    %v1747 = vmul.f32 %v1739, %v747
    %v1748 = vmul.f32 %v1740, %v751
    %v1749 = vmul.f32 %v1741, %v751
    %1758 = vrot.lane.b32.xlu0 %v1742, 1
    %v1759 = vpop.permute.xlu0 %1758
    %1760 = vrot.lane.b32.xlu0 %v1743, 1
    %v1761 = vpop.permute.xlu0 %1760
    %1762 = vrot.lane.b32.xlu0 %v1744, 1
    %v1763 = vpop.permute.xlu0 %1762
    %1764 = vrot.lane.b32.xlu0 %v1745, 1
    %v1765 = vpop.permute.xlu0 %1764
    %1766 = vrot.lane.b32.xlu0 %v1746, 1
    %v1767 = vpop.permute.xlu0 %1766
    %1768 = vrot.lane.b32.xlu0 %v1747, 1
    %v1769 = vpop.permute.xlu0 %1768
    %1770 = vrot.lane.b32.xlu0 %v1748, 1
    %v1771 = vpop.permute.xlu0 %1770
    %1772 = vrot.lane.b32.xlu0 %v1749, 1
    %v1773 = vpop.permute.xlu0 %1772
    %v1774 = vsel %vm801, %v778, %v1759
    %v1775 = vsel %vm801, %v1759, %v1761
    %v1776 = vsel %vm801, %v784, %v1763
    %v1777 = vsel %vm801, %v1763, %v1765
    %v1778 = vsel %vm801, %v790, %v1767
    %v1779 = vsel %vm801, %v1767, %v1769
    %v1780 = vsel %vm801, %v796, %v1771
    %v1781 = vsel %vm801, %v1771, %v1773
    %v1790 = vadd.f32 %v1726, %v1774
    %v1791 = vadd.f32 %v1727, %v1775
    %v1792 = vadd.f32 %v1728, %v1776
    %v1793 = vadd.f32 %v1729, %v1777
    %v1794 = vadd.f32 %v1730, %v1778
    %v1795 = vadd.f32 %v1731, %v1779
    %v1796 = vadd.f32 %v1732, %v1780
    %v1797 = vadd.f32 %v1733, %v1781
    %v1798 = vmul.f32 %v335, %v827
    %v1799 = vmul.f32 %v336, %v830
    %v1800 = vmul.f32 %v339, %v827
    %v1801 = vmul.f32 %v340, %v830
    %v1802 = vmul.f32 %v343, %v827
    %v1803 = vmul.f32 %v344, %v830
    %v1804 = vmul.f32 %v347, %v827
    %v1805 = vmul.f32 %v348, %v830
    %v1806 = vmul.f32 %v1798, %v845
    %v1807 = vmul.f32 %v1799, %v845
    %v1808 = vmul.f32 %v1800, %v849
    %v1809 = vmul.f32 %v1801, %v849
    %v1810 = vmul.f32 %v1802, %v853
    %v1811 = vmul.f32 %v1803, %v853
    %v1812 = vmul.f32 %v1804, %v857
    %v1813 = vmul.f32 %v1805, %v857
    %1822 = vrot.lane.b32.xlu0 %v1806, 127
    %v1823 = vpop.permute.xlu0 %1822
    %1824 = vrot.lane.b32.xlu0 %v1807, 127
    %v1825 = vpop.permute.xlu0 %1824
    %1826 = vrot.lane.b32.xlu0 %v1808, 127
    %v1827 = vpop.permute.xlu0 %1826
    %1828 = vrot.lane.b32.xlu0 %v1809, 127
    %v1829 = vpop.permute.xlu0 %1828
    %1830 = vrot.lane.b32.xlu0 %v1810, 127
    %v1831 = vpop.permute.xlu0 %1830
    %1832 = vrot.lane.b32.xlu0 %v1811, 127
    %v1833 = vpop.permute.xlu0 %1832
    %1834 = vrot.lane.b32.xlu0 %v1812, 127
    %v1835 = vpop.permute.xlu0 %1834
    %1836 = vrot.lane.b32.xlu0 %v1813, 127
    %v1837 = vpop.permute.xlu0 %1836
    %v1838 = vsel %vm723, %v1823, %v1825
    %v1839 = vsel %vm723, %v1825, %v888
    %v1840 = vsel %vm723, %v1827, %v1829
    %v1841 = vsel %vm723, %v1829, %v894
    %v1842 = vsel %vm723, %v1831, %v1833
    %v1843 = vsel %vm723, %v1833, %v900
    %v1844 = vsel %vm723, %v1835, %v1837
    %v1845 = vsel %vm723, %v1837, %v906
    %v1854 = vadd.f32 %v1790, %v1838
    %v1855 = vadd.f32 %v1791, %v1839
    %v1856 = vadd.f32 %v1792, %v1840
    %v1857 = vadd.f32 %v1793, %v1841
    %v1858 = vadd.f32 %v1794, %v1842
    %v1859 = vadd.f32 %v1795, %v1843
    %v1860 = vadd.f32 %v1796, %v1844
    %v1861 = vadd.f32 %v1797, %v1845
    %v1862 = vmul.f32 %v335, %v932
    %v1863 = vmul.f32 %v336, %v935
    %v1864 = vmul.f32 %v339, %v932
    %v1865 = vmul.f32 %v340, %v935
    %v1866 = vmul.f32 %v343, %v932
    %v1867 = vmul.f32 %v344, %v935
    %v1868 = vmul.f32 %v347, %v932
    %v1869 = vmul.f32 %v348, %v935
    %v1870 = vmul.f32 %v1862, %v950
    %v1871 = vmul.f32 %v1863, %v950
    %v1872 = vmul.f32 %v1864, %v954
    %v1873 = vmul.f32 %v1865, %v954
    %v1874 = vmul.f32 %v1866, %v958
    %v1875 = vmul.f32 %v1867, %v958
    %v1876 = vmul.f32 %v1868, %v962
    %v1877 = vmul.f32 %v1869, %v962
    %1886 = vrot.lane.b32.xlu0 %v1870, 113
    %v1887 = vpop.permute.xlu0 %1886
    %1888 = vrot.lane.b32.xlu0 %v1871, 113
    %v1889 = vpop.permute.xlu0 %1888
    %1890 = vrot.lane.b32.xlu0 %v1872, 113
    %v1891 = vpop.permute.xlu0 %1890
    %1892 = vrot.lane.b32.xlu0 %v1873, 113
    %v1893 = vpop.permute.xlu0 %1892
    %1894 = vrot.lane.b32.xlu0 %v1874, 113
    %v1895 = vpop.permute.xlu0 %1894
    %1896 = vrot.lane.b32.xlu0 %v1875, 113
    %v1897 = vpop.permute.xlu0 %1896
    %1898 = vrot.lane.b32.xlu0 %v1876, 113
    %v1899 = vpop.permute.xlu0 %1898
    %1900 = vrot.lane.b32.xlu0 %v1877, 113
    %v1901 = vpop.permute.xlu0 %1900
    %v1902 = vsel %vm616, %v1887, %v1889
    %v1903 = vsel %vm616, %v1889, %v993
    %v1904 = vsel %vm616, %v1891, %v1893
    %v1905 = vsel %vm616, %v1893, %v999
    %v1906 = vsel %vm616, %v1895, %v1897
    %v1907 = vsel %vm616, %v1897, %v1005
    %v1908 = vsel %vm616, %v1899, %v1901
    %v1909 = vsel %vm616, %v1901, %v1011
    %v1918 = vadd.f32 %v1854, %v1902
    %v1919 = vadd.f32 %v1855, %v1903
    %v1920 = vadd.f32 %v1856, %v1904
    %v1921 = vadd.f32 %v1857, %v1905
    %v1922 = vadd.f32 %v1858, %v1906
    %v1923 = vadd.f32 %v1859, %v1907
    %v1924 = vadd.f32 %v1860, %v1908
    %v1925 = vadd.f32 %v1861, %v1909
    %v1926 = vmul.f32 %v335, %v1038
    %v1927 = vmul.f32 %v336, %v1038
    %v1928 = vmul.f32 %v339, %v1042
    %v1929 = vmul.f32 %v340, %v1042
    %v1930 = vmul.f32 %v343, %v1046
    %v1931 = vmul.f32 %v344, %v1046
    %v1932 = vmul.f32 %v347, %v1050
    %v1933 = vmul.f32 %v348, %v1050
    %1942 = vrot.lane.b32.xlu0 %v1926, 112
    %v1943 = vpop.permute.xlu0 %1942
    %1944 = vrot.lane.b32.xlu0 %v1927, 112
    %v1945 = vpop.permute.xlu0 %1944
    %1946 = vrot.lane.b32.xlu0 %v1928, 112
    %v1947 = vpop.permute.xlu0 %1946
    %1948 = vrot.lane.b32.xlu0 %v1929, 112
    %v1949 = vpop.permute.xlu0 %1948
    %1950 = vrot.lane.b32.xlu0 %v1930, 112
    %v1951 = vpop.permute.xlu0 %1950
    %1952 = vrot.lane.b32.xlu0 %v1931, 112
    %v1953 = vpop.permute.xlu0 %1952
    %1954 = vrot.lane.b32.xlu0 %v1932, 112
    %v1955 = vpop.permute.xlu0 %1954
    %1956 = vrot.lane.b32.xlu0 %v1933, 112
    %v1957 = vpop.permute.xlu0 %1956
    %v1958 = vsel %vm1100, %v1943, %v1945
    %v1959 = vsel %vm1100, %v1945, %v1081
    %v1960 = vsel %vm1100, %v1947, %v1949
    %v1961 = vsel %vm1100, %v1949, %v1087
    %v1962 = vsel %vm1100, %v1951, %v1953
    %v1963 = vsel %vm1100, %v1953, %v1093
    %v1964 = vsel %vm1100, %v1955, %v1957
    %v1965 = vsel %vm1100, %v1957, %v1099
    %v1974 = vadd.f32 %v1918, %v1958
    %v1975 = vadd.f32 %v1919, %v1959
    %v1976 = vadd.f32 %v1920, %v1960
    %v1977 = vadd.f32 %v1921, %v1961
    %v1978 = vadd.f32 %v1922, %v1962
    %v1979 = vadd.f32 %v1923, %v1963
    %v1980 = vadd.f32 %v1924, %v1964
    %v1981 = vadd.f32 %v1925, %v1965
    %v1982 = vmul.f32 %v335, %v1126
    %v1983 = vmul.f32 %v336, %v1129
    %v1984 = vmul.f32 %v339, %v1126
    %v1985 = vmul.f32 %v340, %v1129
    %v1986 = vmul.f32 %v343, %v1126
    %v1987 = vmul.f32 %v344, %v1129
    %v1988 = vmul.f32 %v347, %v1126
    %v1989 = vmul.f32 %v348, %v1129
    %v1990 = vmul.f32 %v1982, %v1144
    %v1991 = vmul.f32 %v1983, %v1144
    %v1992 = vmul.f32 %v1984, %v1148
    %v1993 = vmul.f32 %v1985, %v1148
    %v1994 = vmul.f32 %v1986, %v1152
    %v1995 = vmul.f32 %v1987, %v1152
    %v1996 = vmul.f32 %v1988, %v1156
    %v1997 = vmul.f32 %v1989, %v1156
    %2006 = vrot.lane.b32.xlu0 %v1990, 111
    %v2007 = vpop.permute.xlu0 %2006
    %2008 = vrot.lane.b32.xlu0 %v1991, 111
    %v2009 = vpop.permute.xlu0 %2008
    %2010 = vrot.lane.b32.xlu0 %v1992, 111
    %v2011 = vpop.permute.xlu0 %2010
    %2012 = vrot.lane.b32.xlu0 %v1993, 111
    %v2013 = vpop.permute.xlu0 %2012
    %2014 = vrot.lane.b32.xlu0 %v1994, 111
    %v2015 = vpop.permute.xlu0 %2014
    %2016 = vrot.lane.b32.xlu0 %v1995, 111
    %v2017 = vpop.permute.xlu0 %2016
    %2018 = vrot.lane.b32.xlu0 %v1996, 111
    %v2019 = vpop.permute.xlu0 %2018
    %2020 = vrot.lane.b32.xlu0 %v1997, 111
    %v2021 = vpop.permute.xlu0 %2020
    %v2022 = vsel %vm418, %v2007, %v2009
    %v2023 = vsel %vm418, %v2009, %v1187
    %v2024 = vsel %vm418, %v2011, %v2013
    %v2025 = vsel %vm418, %v2013, %v1193
    %v2026 = vsel %vm418, %v2015, %v2017
    %v2027 = vsel %vm418, %v2017, %v1199
    %v2028 = vsel %vm418, %v2019, %v2021
    %v2029 = vsel %vm418, %v2021, %v1205
    %v2038 = vadd.f32 %v1974, %v2022
    %v2039 = vadd.f32 %v1975, %v2023
    %v2040 = vadd.f32 %v1976, %v2024
    %v2041 = vadd.f32 %v1977, %v2025
    %v2042 = vadd.f32 %v1978, %v2026
    %v2043 = vadd.f32 %v1979, %v2027
    %v2044 = vadd.f32 %v1980, %v2028
    %v2045 = vadd.f32 %v1981, %v2029
    %v2046 = vadd.f32 %v2038, %v1232
    %v2047 = vadd.f32 %v2039, %v1232
    %v2048 = vadd.f32 %v2040, %v1236
    %v2049 = vadd.f32 %v2041, %v1236
    %v2050 = vadd.f32 %v2042, %v1240
    %v2051 = vadd.f32 %v2043, %v1240
    %v2052 = vadd.f32 %v2044, %v1244
    %v2053 = vadd.f32 %v2045, %v1244
    %v2054 = vadd.f32 %v2046, 3.0
    %v2055 = vadd.f32 %v2047, 3.0
    %v2056 = vadd.f32 %v2048, 3.0
    %v2057 = vadd.f32 %v2049, 3.0
    %v2058 = vadd.f32 %v2050, 3.0
    %v2059 = vadd.f32 %v2051, 3.0
    %v2060 = vadd.f32 %v2052, 3.0
    %v2061 = vadd.f32 %v2053, 3.0
    %v2062 = vmax.f32 %v2054, 0.0
    %v2063 = vmax.f32 %v2055, 0.0
    %v2064 = vmax.f32 %v2056, 0.0
    %v2065 = vmax.f32 %v2057, 0.0
    %v2066 = vmax.f32 %v2058, 0.0
    %v2067 = vmax.f32 %v2059, 0.0
    %v2068 = vmax.f32 %v2060, 0.0
    %v2069 = vmax.f32 %v2061, 0.0
    %v2070 = vmin.f32 %v2062, 6.0
    %v2071 = vmin.f32 %v2063, 6.0
    %v2072 = vmin.f32 %v2064, 6.0
    %v2073 = vmin.f32 %v2065, 6.0
    %v2074 = vmin.f32 %v2066, 6.0
    %v2075 = vmin.f32 %v2067, 6.0
    %v2076 = vmin.f32 %v2068, 6.0
    %v2077 = vmin.f32 %v2069, 6.0
    %v2078 = vmul.f32 %v2046, %v2070
    %v2079 = vmul.f32 %v2047, %v2071
    %v2080 = vmul.f32 %v2048, %v2072
    %v2081 = vmul.f32 %v2049, %v2073
    %v2082 = vmul.f32 %v2050, %v2074
    %v2083 = vmul.f32 %v2051, %v2075
    %v2084 = vmul.f32 %v2052, %v2076
    %v2085 = vmul.f32 %v2053, %v2077
    %v2086 = vmul.f32 %v2078, %v332
    %v2087 = vmul.f32 %v2079, %v332
    %v2088 = vmul.f32 %v2080, %v332
    %v2089 = vmul.f32 %v2081, %v332
    %v2090 = vmul.f32 %v2082, %v332
    %v2091 = vmul.f32 %v2083, %v332
    %v2092 = vmul.f32 %v2084, %v332
    %v2093 = vmul.f32 %v2085, %v332
    %2094 = vmatprep.subr.mxu0 %v2087
    %2095 = vmatpush1.msra.mxu0 %v2086
    %2096 = vmatprep.subr.mxu0 %v2089
    %2097 = vmatpush1.msra.mxu0 %v2088
    %2098 = vmatprep.subr.mxu0 %v2091
    %2099 = vmatpush1.msra.mxu0 %v2090
    %2100 = vmatprep.subr.mxu0 %v2093
    %2101 = vmatpush1.msra.mxu0 %v2092
    %2102 = vmatprep.subr.mxu0 0.0
    %2103 = vmatpush1.msra.mxu0 0.0
    %2104 = vmatprep.subr.mxu0 0.0
    %2105 = vmatpush1.msra.mxu0 0.0
    %2106 = vmatprep.subr.mxu0 0.0
    %2107 = vmatpush1.msra.mxu0 0.0
    %2108 = vmatprep.subr.mxu0 0.0
    %2109 = vmatpush1.msra.mxu0 0.0
    %2110 = vmatprep.subr.mxu0 0.0
    %2111 = vmatpush1.msra.mxu0 0.0
    %2112 = vmatprep.subr.mxu0 0.0
    %2113 = vmatpush1.msra.mxu0 0.0
    %2114 = vmatprep.subr.mxu0 0.0
    %2115 = vmatpush1.msra.mxu0 0.0
    %2116 = vmatprep.subr.mxu0 0.0
    %2117 = vmatpush1.msra.mxu0 0.0
    %2118 = vmatprep.subr.mxu0 0.0
    %2119 = vmatpush1.msra.mxu0 0.0
    %2120 = vmatprep.subr.mxu0 0.0
    %2121 = vmatpush1.msra.mxu0 0.0
    %2122 = vmatprep.subr.mxu0 0.0
    %2123 = vmatpush1.msra.mxu0 0.0
    %2124 = vmatprep.subr.mxu0 0.0
    %2125 = vmatpush1.msra.mxu0 0.0
    %2126 = vmatprep.subr.mxu0 0.0
    %2127 = vmatpush1.msra.mxu0 0.0
    %2128 = vmatprep.subr.mxu0 0.0
    %2129 = vmatpush1.msra.mxu0 0.0
    %2130 = vmatprep.subr.mxu0 0.0
    %2131 = vmatpush1.msra.mxu0 0.0
    %2132 = vmatprep.subr.mxu0 0.0
    %2133 = vmatpush1.msra.mxu0 0.0
    %2134 = vmatprep.subr.mxu0 0.0
    %2135 = vmatpush1.msra.mxu0 0.0
    %2136 = vmatprep.subr.mxu0 0.0
    %2137 = vmatpush1.msra.mxu0 0.0
    %2138 = vmatprep.subr.mxu0 0.0
    %2139 = vmatpush1.msra.mxu0 0.0
    %2140 = vmatprep.subr.mxu0 0.0
    %2141 = vmatpush1.msra.mxu0 0.0
    %2142 = vmatprep.subr.mxu0 0.0
    %2143 = vmatpush1.msra.mxu0 0.0
    %2144 = vmatprep.subr.mxu0 0.0
    %2145 = vmatpush1.msra.mxu0 0.0
    %2146 = vmatprep.subr.mxu0 0.0
    %2147 = vmatpush1.msra.mxu0 0.0
    %2148 = vmatprep.subr.mxu0 0.0
    %2149 = vmatpush1.msra.mxu0 0.0
    %2150 = vmatprep.subr.mxu0 0.0
    %2151 = vmatpush1.msra.mxu0 0.0
    %2152 = vmatprep.subr.mxu0 0.0
    %2153 = vmatpush1.msra.mxu0 0.0
    %2154 = vmatprep.subr.mxu0 0.0
    %2155 = vmatpush1.msra.mxu0 0.0
    %2156 = vmatprep.subr.mxu0 0.0
    %2157 = vmatpush1.msra.mxu0 0.0
    %2158 = vmatprep.mubr.f32.mxu0 0.0
    %2159 = vmatmul.mubr.f32.gmra.mrb[0].mxu0 %v1296
    %v2160 = vpop.f32.mrb[0].mxu0
    %v2161 = vadd.f32 0.0, %v2160
    %v2162 = vpop.f32.mrb[0].mxu0
    %v2163 = vadd.f32 0.0, %v2162
    %2164 = vdwg.mxu0
    %v2165 = vadd.f32 %v2161, %v2163
    %2166 = vadd.xlane.f32.xlu0 %v2165
    %v2167 = vpop.xlane.xlu0 %2166
    %v2168 = vmul.f32 %v2167, %v1372
    %v2169 = vadd.f32 %v2168, %v60
    %v2170 = vmax.f32 %v2169, 0.0
    %2172 = vset.pattern.permute.xlu0 64
    %2173 = vperm.xlu0 %2172, %v2170
    %v2174 = vpop.permute.xlu0 %2173
    %2176 = vmatprep.subr.mxu0 0.0
    %2177 = vmatpush1.msra.mxu0 %v2174
    %2178 = vmatprep.subr.mxu0 0.0
    %2179 = vmatpush1.msra.mxu0 0.0
    %2180 = vmatprep.subr.mxu0 0.0
    %2181 = vmatpush1.msra.mxu0 0.0
    %2182 = vmatprep.subr.mxu0 0.0
    %2183 = vmatpush1.msra.mxu0 0.0
    %2184 = vmatprep.subr.mxu0 0.0
    %2185 = vmatpush1.msra.mxu0 0.0
    %2186 = vmatprep.subr.mxu0 0.0
    %2187 = vmatpush1.msra.mxu0 0.0
    %2188 = vmatprep.subr.mxu0 0.0
    %2189 = vmatpush1.msra.mxu0 0.0
    %2190 = vmatprep.subr.mxu0 0.0
    %2191 = vmatpush1.msra.mxu0 0.0
    %2192 = vmatprep.subr.mxu0 0.0
    %2193 = vmatpush1.msra.mxu0 0.0
    %2194 = vmatprep.subr.mxu0 0.0
    %2195 = vmatpush1.msra.mxu0 0.0
    %2196 = vmatprep.subr.mxu0 0.0
    %2197 = vmatpush1.msra.mxu0 0.0
    %2198 = vmatprep.subr.mxu0 0.0
    %2199 = vmatpush1.msra.mxu0 0.0
    %2200 = vmatprep.subr.mxu0 0.0
    %2201 = vmatpush1.msra.mxu0 0.0
    %2202 = vmatprep.subr.mxu0 0.0
    %2203 = vmatpush1.msra.mxu0 0.0
    %2204 = vmatprep.subr.mxu0 0.0
    %2205 = vmatpush1.msra.mxu0 0.0
    %2206 = vmatprep.subr.mxu0 0.0
    %2207 = vmatpush1.msra.mxu0 0.0
    %2208 = vmatprep.subr.mxu0 0.0
    %2209 = vmatpush1.msra.mxu0 0.0
    %2210 = vmatprep.subr.mxu0 0.0
    %2211 = vmatpush1.msra.mxu0 0.0
    %2212 = vmatprep.subr.mxu0 0.0
    %2213 = vmatpush1.msra.mxu0 0.0
    %2214 = vmatprep.subr.mxu0 0.0
    %2215 = vmatpush1.msra.mxu0 0.0
    %2216 = vmatprep.subr.mxu0 0.0
    %2217 = vmatpush1.msra.mxu0 0.0
    %2218 = vmatprep.subr.mxu0 0.0
    %2219 = vmatpush1.msra.mxu0 0.0
    %2220 = vmatprep.subr.mxu0 0.0
    %2221 = vmatpush1.msra.mxu0 0.0
    %2222 = vmatprep.subr.mxu0 0.0
    %2223 = vmatpush1.msra.mxu0 0.0
    %2224 = vmatprep.subr.mxu0 0.0
    %2225 = vmatpush1.msra.mxu0 0.0
    %2226 = vmatprep.subr.mxu0 0.0
    %2227 = vmatpush1.msra.mxu0 0.0
    %2228 = vmatprep.subr.mxu0 0.0
    %2229 = vmatpush1.msra.mxu0 0.0
    %2230 = vmatprep.subr.mxu0 0.0
    %2231 = vmatpush1.msra.mxu0 0.0
    %2232 = vmatprep.subr.mxu0 0.0
    %2233 = vmatpush1.msra.mxu0 0.0
    %2234 = vmatprep.subr.mxu0 0.0
    %2235 = vmatpush1.msra.mxu0 0.0
    %2236 = vmatprep.subr.mxu0 0.0
    %2237 = vmatpush1.msra.mxu0 0.0
    %2238 = vmatprep.subr.mxu0 0.0
    %2239 = vmatpush1.msra.mxu0 0.0
    %2240 = vmatprep.mubr.f32.mxu0 0.0
    %2241 = vmatmul.mubr.f32.gmra.mrb[0].mxu0 %v1389
    %v2242 = vpop.f32.mrb[0].mxu0
    %v2243 = vadd.f32 0.0, %v2242
    %v2244 = vpop.f32.mrb[0].mxu0
    %2245 = vmatprep.mubr.f32.mxu0 0.0
    %2246 = vmatmul.mubr.f32.gmra.mrb[0].mxu0 %v1391
    %v2247 = vpop.f32.mrb[0].mxu0
    %v2248 = vadd.f32 0.0, %v2247
    %v2249 = vpop.f32.mrb[0].mxu0
    %2250 = vmatprep.mubr.f32.mxu0 0.0
    %2251 = vmatmul.mubr.f32.gmra.mrb[0].mxu0 %v1393
    %v2252 = vpop.f32.mrb[0].mxu0
    %v2253 = vadd.f32 0.0, %v2252
    %v2254 = vpop.f32.mrb[0].mxu0
    %2255 = vmatprep.mubr.f32.mxu0 0.0
    %2256 = vmatmul.mubr.f32.gmra.mrb[0].mxu0 %v1395
    %v2257 = vpop.f32.mrb[0].mxu0
    %v2258 = vadd.f32 0.0, %v2257
    %v2259 = vpop.f32.mrb[0].mxu0
    %2260 = vdwg.mxu0
    %v2261 = vadd.f32 %v2243, %v1483
    %v2262 = vadd.f32 %v2248, %v1485
    %v2263 = vadd.f32 %v2253, %v1487
    %v2264 = vadd.f32 %v2258, %v1489
    %v2265 = vadd.f32 %v2261, 3.0
    %v2266 = vadd.f32 %v2262, 3.0
    %v2267 = vadd.f32 %v2263, 3.0
    %v2268 = vadd.f32 %v2264, 3.0
    %v2269 = vmax.f32 %v2265, 0.0
    %v2270 = vmax.f32 %v2266, 0.0
    %v2271 = vmax.f32 %v2267, 0.0
    %v2272 = vmax.f32 %v2268, 0.0
    %v2273 = vmin.f32 %v2269, 6.0
    %v2274 = vmin.f32 %v2270, 6.0
    %v2275 = vmin.f32 %v2271, 6.0
    %v2276 = vmin.f32 %v2272, 6.0
    %v2277 = vmul.f32 %v2273, %v332
    %v2278 = vmul.f32 %v2274, %v332
    %v2279 = vmul.f32 %v2275, %v332
    %v2280 = vmul.f32 %v2276, %v332
    %2282 = vset.pattern.permute.xlu0 0
    %2283 = vperm.xlu0 %2282, %v2277
    %v2284 = vpop.permute.xlu0 %2283
    %2287 = vset.pattern.permute.xlu0 0
    %2288 = vperm.xlu0 %2287, %v2278
    %v2289 = vpop.permute.xlu0 %2288
    %2292 = vset.pattern.permute.xlu0 0
    %2293 = vperm.xlu0 %2292, %v2279
    %v2294 = vpop.permute.xlu0 %2293
    %2297 = vset.pattern.permute.xlu0 0
    %2298 = vperm.xlu0 %2297, %v2280
    %v2299 = vpop.permute.xlu0 %2298
    %v2301 = vmul.f32 %v2086, %v2284
    %v2302 = vmul.f32 %v2087, %v2284
    %v2303 = vmul.f32 %v2088, %v2289
    %v2304 = vmul.f32 %v2089, %v2289
    %v2305 = vmul.f32 %v2090, %v2294
    %v2306 = vmul.f32 %v2091, %v2294
    %v2307 = vmul.f32 %v2092, %v2299
    %v2308 = vmul.f32 %v2093, %v2299
    %2309 = vset.pattern.permute.xlu0 65
    %2310 = vperm.xlu0 %2309, %v60
    %v2311 = vpop.permute.xlu0 %2310
    %2313 = vrot.lane.b32.xlu0 %v60, 96
    %v2314 = vpop.permute.xlu0 %2313
    %v2315 = vsel %vm1294, %v2314, 0
    %2317 = vmatprep.subr.mxu0 %v1535
    %2318 = vmatpush1.msra.mxu0 %v1534
    %2319 = vmatprep.subr.mxu0 %v1537
    %2320 = vmatpush1.msra.mxu0 %v1536
    %2321 = vmatprep.subr.mxu0 %v1539
    %2322 = vmatpush1.msra.mxu0 %v1538
    %2323 = vmatprep.subr.mxu0 %v1541
    %2324 = vmatpush1.msra.mxu0 %v1540
    %2325 = vmatprep.subr.mxu0 0.0
    %2326 = vmatpush1.msra.mxu0 0.0
    %2327 = vmatprep.subr.mxu0 0.0
    %2328 = vmatpush1.msra.mxu0 0.0
    %2329 = vmatprep.subr.mxu0 0.0
    %2330 = vmatpush1.msra.mxu0 0.0
    %2331 = vmatprep.subr.mxu0 0.0
    %2332 = vmatpush1.msra.mxu0 0.0
    %2333 = vmatprep.subr.mxu0 0.0
    %2334 = vmatpush1.msra.mxu0 0.0
    %2335 = vmatprep.subr.mxu0 0.0
    %2336 = vmatpush1.msra.mxu0 0.0
    %2337 = vmatprep.subr.mxu0 0.0
    %2338 = vmatpush1.msra.mxu0 0.0
    %2339 = vmatprep.subr.mxu0 0.0
    %2340 = vmatpush1.msra.mxu0 0.0
    %2341 = vmatprep.subr.mxu0 0.0
    %2342 = vmatpush1.msra.mxu0 0.0
    %2343 = vmatprep.subr.mxu0 0.0
    %2344 = vmatpush1.msra.mxu0 0.0
    %2345 = vmatprep.subr.mxu0 0.0
    %2346 = vmatpush1.msra.mxu0 0.0
    %2347 = vmatprep.subr.mxu0 0.0
    %2348 = vmatpush1.msra.mxu0 0.0
    %2349 = vmatprep.subr.mxu0 0.0
    %2350 = vmatpush1.msra.mxu0 0.0
    %2351 = vmatprep.subr.mxu0 0.0
    %2352 = vmatpush1.msra.mxu0 0.0
    %2353 = vmatprep.subr.mxu0 0.0
    %2354 = vmatpush1.msra.mxu0 0.0
    %2355 = vmatprep.subr.mxu0 0.0
    %2356 = vmatpush1.msra.mxu0 0.0
    %2357 = vmatprep.subr.mxu0 0.0
    %2358 = vmatpush1.msra.mxu0 0.0
    %2359 = vmatprep.subr.mxu0 0.0
    %2360 = vmatpush1.msra.mxu0 0.0
    %2361 = vmatprep.subr.mxu0 0.0
    %2362 = vmatpush1.msra.mxu0 0.0
    %2363 = vmatprep.subr.mxu0 0.0
    %2364 = vmatpush1.msra.mxu0 0.0
    %2365 = vmatprep.subr.mxu0 0.0
    %2366 = vmatpush1.msra.mxu0 0.0
    %2367 = vmatprep.subr.mxu0 0.0
    %2368 = vmatpush1.msra.mxu0 0.0
    %2369 = vmatprep.subr.mxu0 0.0
    %2370 = vmatpush1.msra.mxu0 0.0
    %2371 = vmatprep.subr.mxu0 0.0
    %2372 = vmatpush1.msra.mxu0 0.0
    %2373 = vmatprep.subr.mxu0 0.0
    %2374 = vmatpush1.msra.mxu0 0.0
    %2375 = vmatprep.subr.mxu0 0.0
    %2376 = vmatpush1.msra.mxu0 0.0
    %2377 = vmatprep.subr.mxu0 0.0
    %2378 = vmatpush1.msra.mxu0 0.0
    %2379 = vmatprep.subr.mxu0 0.0
    %2380 = vmatpush1.msra.mxu0 0.0
    %2381 = vmatprep.mubr.f32.mxu0 0.0
    %2382 = vmatmul.mubr.f32.gmra.mrb[0].mxu0 %v2315
    %v2383 = vpop.f32.mrb[0].mxu0
    %v2384 = vadd.f32 %v2311, %v2383
    %v2385 = vpop.f32.mrb[0].mxu0
    %v2386 = vadd.f32 %v2311, %v2385
    %2387 = vdwg.mxu0
    %2388 = vmatprep.subr.mxu0 %v2302
    %2389 = vmatpush1.msra.mxu0 %v2301
    %2390 = vmatprep.subr.mxu0 %v2304
    %2391 = vmatpush1.msra.mxu0 %v2303
    %2392 = vmatprep.subr.mxu0 %v2306
    %2393 = vmatpush1.msra.mxu0 %v2305
    %2394 = vmatprep.subr.mxu0 %v2308
    %2395 = vmatpush1.msra.mxu0 %v2307
    %2396 = vmatprep.subr.mxu0 0.0
    %2397 = vmatpush1.msra.mxu0 0.0
    %2398 = vmatprep.subr.mxu0 0.0
    %2399 = vmatpush1.msra.mxu0 0.0
    %2400 = vmatprep.subr.mxu0 0.0
    %2401 = vmatpush1.msra.mxu0 0.0
    %2402 = vmatprep.subr.mxu0 0.0
    %2403 = vmatpush1.msra.mxu0 0.0
    %2404 = vmatprep.subr.mxu0 0.0
    %2405 = vmatpush1.msra.mxu0 0.0
    %2406 = vmatprep.subr.mxu0 0.0
    %2407 = vmatpush1.msra.mxu0 0.0
    %2408 = vmatprep.subr.mxu0 0.0
    %2409 = vmatpush1.msra.mxu0 0.0
    %2410 = vmatprep.subr.mxu0 0.0
    %2411 = vmatpush1.msra.mxu0 0.0
    %2412 = vmatprep.subr.mxu0 0.0
    %2413 = vmatpush1.msra.mxu0 0.0
    %2414 = vmatprep.subr.mxu0 0.0
    %2415 = vmatpush1.msra.mxu0 0.0
    %2416 = vmatprep.subr.mxu0 0.0
    %2417 = vmatpush1.msra.mxu0 0.0
    %2418 = vmatprep.subr.mxu0 0.0
    %2419 = vmatpush1.msra.mxu0 0.0
    %2420 = vmatprep.subr.mxu0 0.0
    %2421 = vmatpush1.msra.mxu0 0.0
    %2422 = vmatprep.subr.mxu0 0.0
    %2423 = vmatpush1.msra.mxu0 0.0
    %2424 = vmatprep.subr.mxu0 0.0
    %2425 = vmatpush1.msra.mxu0 0.0
    %2426 = vmatprep.subr.mxu0 0.0
    %2427 = vmatpush1.msra.mxu0 0.0
    %2428 = vmatprep.subr.mxu0 0.0
    %2429 = vmatpush1.msra.mxu0 0.0
    %2430 = vmatprep.subr.mxu0 0.0
    %2431 = vmatpush1.msra.mxu0 0.0
    %2432 = vmatprep.subr.mxu0 0.0
    %2433 = vmatpush1.msra.mxu0 0.0
    %2434 = vmatprep.subr.mxu0 0.0
    %2435 = vmatpush1.msra.mxu0 0.0
    %2436 = vmatprep.subr.mxu0 0.0
    %2437 = vmatpush1.msra.mxu0 0.0
    %2438 = vmatprep.subr.mxu0 0.0
    %2439 = vmatpush1.msra.mxu0 0.0
    %2440 = vmatprep.subr.mxu0 0.0
    %2441 = vmatpush1.msra.mxu0 0.0
    %2442 = vmatprep.subr.mxu0 0.0
    %2443 = vmatpush1.msra.mxu0 0.0
    %2444 = vmatprep.subr.mxu0 0.0
    %2445 = vmatpush1.msra.mxu0 0.0
    %2446 = vmatprep.subr.mxu0 0.0
    %2447 = vmatpush1.msra.mxu0 0.0
    %2448 = vmatprep.subr.mxu0 0.0
    %2449 = vmatpush1.msra.mxu0 0.0
    %2450 = vmatprep.subr.mxu0 0.0
    %2451 = vmatpush1.msra.mxu0 0.0
    %2452 = vmatprep.mubr.f32.mxu0 0.0
    %2453 = vmatmul.mubr.f32.gmra.mrb[0].mxu0 %v2315
    %v2454 = vpop.f32.mrb[0].mxu0
    %v2455 = vadd.f32 %v2311, %v2454
    %v2456 = vpop.f32.mrb[0].mxu0
    %v2457 = vadd.f32 %v2311, %v2456
    %2458 = vdwg.mxu0
    %v2459 = vadd.f32 %v2384, %v52
    %v2460 = vadd.f32 %v2386, %v53
    %v2461 = vadd.f32 %v2455, %v54
    %v2462 = vadd.f32 %v2457, %v55
    %2463 = vst [vmem:[#allocation8] sm:$0xff] %v2459
    %2464 = vst [vmem:[#allocation8 + $0x8] sm:$0xff] %v2460
    %2465 = vst [vmem:[#allocation8 + $0x10] sm:$0xff] %v2461
    %2466 = vst [vmem:[#allocation8 + $0x18] sm:$0xff] %v2462
    // Predicated region
    $region26: #{tpu_custom_call.1} parent=1 // pred_check
      _
    $region27: #{tpu_custom_call.1} parent=1 // pred_check_branch
      %2468 = sbr.rel (0) target = $region29
    $region28: #{tpu_custom_call.1} parent=1 // pred_region
      %s2470 = ssub.s32 512, 512
      %2471 = vsyncadd [#allocation4], %s2470
      %s2473 = sshll.u32 [#allocation8], 4
      %s2474 = int_to_ptr.vmem [resolvable:$true] %s2473
      %2476 = dma.vmem_to_hbm [thread:$0]  %s2474, 512, %s3, [#allocation4]
    $region29: #{tpu_custom_call.1} parent=1 // pred_fallthru
      _
    // Predicated region
    $region30: #{tpu_custom_call.1} parent=1 // pred_check
      _
    $region31: #{tpu_custom_call.1} parent=1 // pred_check_branch
      %2478 = sbr.rel (0) target = $region33
    $region32: #{tpu_custom_call.1} parent=1 // pred_region
      %2479 = dma.done [#allocation4], 512
    $region33: #{tpu_custom_call.1} parent=1 // pred_fallthru
      _
    %2480 = vsyncpa [#allocation3], 1
    %2481 = vsyncpa [#allocation6], 1
    %2482 = vsyncpa [#allocation4], 1

</llo_original>
